<compile_context>
chip_gen: v7x
topology: tpu7x:2x2x1
jax: 0.10.0
libtpu: 0.0.40
codegen_flags: <defaults>
</compile_context>

<pallas_src>
import functools

import jax
import jax.numpy as jnp
from jax.experimental import pallas as pl
from jax.experimental.pallas import tpu as pltpu


def _round_up(n: int, m: int) -> int:
    return ((n + m - 1) // m) * m


# --------------------------------------------------------------------------- #
# Kernel
# --------------------------------------------------------------------------- #
def _cvae_kernel(
    x_ref, c_ref, eps_ref,                              # batch-tiled inputs
    w_enc_x_ref, w_enc_c_ref, b_enc_ref,                # resident weights
    w_head_ref, b_head_ref,
    w_dec1_z_ref, w_dec1_c_ref, b_dec1_ref,
    w_dec2_ref, b_dec2_ref,
    gen_ref, head_ref,                                  # batch-tiled outputs
    *, latent_pad: int,
):
    cdt = w_enc_x_ref.dtype  # matmul compute dtype (bf16), f32 accumulation

    x = x_ref[...].astype(cdt)      # (TM, 784) f32 -> bf16 in-kernel
    c = c_ref[...]                  # (TM, 128) bf16 one-hot (padded cols are 0)

    # ---- Encoder: hidden = relu(x @ W_enc_x + c @ W_enc_c + b_enc) ----
    hidden = (
        jnp.dot(x, w_enc_x_ref[...], preferred_element_type=jnp.float32)
        + jnp.dot(c, w_enc_c_ref[...], preferred_element_type=jnp.float32)
        + b_enc_ref[...]
    )
    hidden = jnp.maximum(hidden, 0.0)

    # ---- Fused mu / log_var head: hidden @ [W_mu | W_var] + [b_mu | b_var] ----
    head = jnp.dot(hidden.astype(cdt), w_head_ref[...],
                   preferred_element_type=jnp.float32) + b_head_ref[...]
    mu = head[:, :latent_pad]
    log_var = head[:, latent_pad:]

    # ---- Reparameterization: z = eps * exp(log_var / 2) + mu (f32) ----
    z = eps_ref[...].astype(jnp.float32) * jnp.exp(log_var * 0.5) + mu

    # ---- Decoder: h2 = relu(z @ W_dec1_z + c @ W_dec1_c + b_dec1) ----
    h2 = (
        jnp.dot(z.astype(cdt), w_dec1_z_ref[...], preferred_element_type=jnp.float32)
        + jnp.dot(c, w_dec1_c_ref[...], preferred_element_type=jnp.float32)
        + b_dec1_ref[...]
    )
    h2 = jnp.maximum(h2, 0.0)

    # ---- Output: generated_x = sigmoid(h2 @ W_dec2 + b_dec2) ----
    logits = jnp.dot(h2.astype(cdt), w_dec2_ref[...],
                     preferred_element_type=jnp.float32) + b_dec2_ref[...]

    gen_ref[...] = jax.nn.sigmoid(logits).astype(gen_ref.dtype)   # bf16 store
    head_ref[...] = head                                          # [mu | log_var]


# --------------------------------------------------------------------------- #
# Wrapper
# --------------------------------------------------------------------------- #
@functools.partial(jax.jit, static_argnames=("block_rows",))
def cvae_forward(x, c1, eps, packed, block_rows: int = 512):
    """Runs CVAE.forward.  Returns (generated_x [bf16], z_mu [f32], z_var [f32])."""
    B, input_dim = x.shape
    latent_dim = eps.shape[1]
    n_classes = c1.shape[1]

    H_pad = packed["w_enc_x"].shape[1]
    C_pad = packed["w_enc_c"].shape[0]
    L_pad = packed["w_dec1_z"].shape[0]
    D_out = packed["w_dec2"].shape[1]
    cdt = packed["w_enc_x"].dtype
    csize = jnp.dtype(cdt).itemsize

    # Batch tile: multiple of 8 sublanes, capped at block_rows, and chosen so
    # the grid has >= 2 steps whenever B allows (both TensorCores on v7x).
    half = -(-B // 2)
    TM = min(block_rows, _round_up(max(half, 8), 8))
    B_pad = _round_up(B, TM)
    grid = (B_pad // TM,)

    # ---- x stays f32 and unpadded in features; only batch rows get padded. ----
    x_p = x.astype(jnp.float32)
    if B_pad != B:
        x_p = jnp.pad(x_p, ((0, B_pad - B), (0, 0)))
    # One-hot condition -> lane-padded bf16 tile (values 0/1 are exact in bf16).
    c_p = jnp.pad(c1, ((0, B_pad - B), (0, C_pad - n_classes))).astype(cdt)
    # Gaussian noise -> lane-padded bf16 tile (precision of noise is irrelevant).
    eps_p = jnp.pad(eps, ((0, B_pad - B), (0, L_pad - latent_dim))).astype(cdt)

    row_spec = lambda cols: pl.BlockSpec((TM, cols), lambda i: (i, 0))
    const_spec = lambda shape: pl.BlockSpec(shape, lambda i: (0, 0))

    in_specs = [
        row_spec(input_dim),             # x (f32, full feature dim)
        row_spec(C_pad),                 # one-hot condition (bf16)
        row_spec(L_pad),                 # eps (bf16)
        const_spec((input_dim, H_pad)),  # W_enc_x
        const_spec((C_pad, H_pad)),      # W_enc_c
        const_spec((1, H_pad)),          # b_enc
        const_spec((H_pad, 2 * L_pad)),  # [W_mu | W_var]
        const_spec((1, 2 * L_pad)),      # [b_mu | b_var]
        const_spec((L_pad, H_pad)),      # W_dec1_z
        const_spec((C_pad, H_pad)),      # W_dec1_c
        const_spec((1, H_pad)),          # b_dec1
        const_spec((H_pad, D_out)),      # W_dec2
        const_spec((1, D_out)),          # b_dec2
    ]
    out_specs = (row_spec(D_out), row_spec(2 * L_pad))
    out_shapes = (
        jax.ShapeDtypeStruct((B_pad, D_out), cdt),          # generated_x (bf16)
        jax.ShapeDtypeStruct((B_pad, 2 * L_pad), jnp.float32),  # [mu | log_var]
    )

    # ---- VMEM budget: (double-buffered) weights + row tiles + f32 temps. ----
    w_bytes = (input_dim * H_pad + 2 * C_pad * H_pad + H_pad * 2 * L_pad
               + L_pad * H_pad + H_pad * D_out) * csize \
              + (2 * H_pad + 2 * L_pad + D_out) * 4
    tile_in = TM * (input_dim * 4 + (C_pad + L_pad) * csize)
    tile_out = TM * (D_out * csize + 2 * L_pad * 4)
    tmp_bytes = TM * (2 * H_pad + 2 * L_pad + 2 * D_out) * 4
    vmem_limit = min(56 << 20,
                     2 * (w_bytes + tile_in + tile_out) + tmp_bytes + (8 << 20))

    gen_p, head_p = pl.pallas_call(
        functools.partial(_cvae_kernel, latent_pad=L_pad),
        out_shape=out_shapes,
        grid=grid,
        in_specs=in_specs,
        out_specs=out_specs,
        compiler_params=pltpu.CompilerParams(
            dimension_semantics=("parallel",),
            vmem_limit_bytes=int(vmem_limit),
        ),
    )(
        x_p, c_p, eps_p,
        packed["w_enc_x"], packed["w_enc_c"], packed["b_enc"],
        packed["w_head"], packed["b_head"],
        packed["w_dec1_z"], packed["w_dec1_c"], packed["b_dec1"],
        packed["w_dec2"], packed["b_dec2"],
    )

    gen = gen_p[:B]                                       # bf16, (B, 784)
    mu = head_p[:B, :latent_dim]                          # f32
    log_var = head_p[:B, L_pad:L_pad + latent_dim]        # f32
    return gen, mu, log_var


# --------------------------------------------------------------------------- #
# Parameters
# --------------------------------------------------------------------------- #
def init_params(key, input_dim, hidden_dim, latent_dim, n_classes):
    """Deterministic synthetic params, stored as [in, out] (transpose of nn.Linear)."""
    ks = jax.random.split(key, 5)

    def lin(k, fan_in, fan_out):
        bound = 1.0 / jnp.sqrt(jnp.float32(fan_in))
        kw, kb = jax.random.split(k)
        w = jax.random.uniform(kw, (fan_in, fan_out), jnp.float32, -bound, bound)
        b = jax.random.uniform(kb, (1, fan_out), jnp.float32, -bound, bound)
        return w, b

    w1, b1 = lin(ks[0], input_dim + n_classes, hidden_dim)   # encoder.linear
    w_mu, b_mu = lin(ks[1], hidden_dim, latent_dim)          # encoder.mu
    w_var, b_var = lin(ks[2], hidden_dim, latent_dim)        # encoder.var
    w3, b3 = lin(ks[3], latent_dim + n_classes, hidden_dim)  # decoder.latent_to_hidden
    w4, b4 = lin(ks[4], hidden_dim, input_dim)               # decoder.hidden_to_out

    return {
        "w_enc_x": w1[:input_dim], "w_enc_c": w1[input_dim:], "b_enc": b1,
        "w_mu": w_mu, "b_mu": b_mu,
        "w_var": w_var, "b_var": b_var,
        "w_dec1_z": w3[:latent_dim], "w_dec1_c": w3[latent_dim:], "b_dec1": b3,
        "w_dec2": w4, "b_dec2": b4,
    }


def pack_params(params, *, input_dim, hidden_dim, latent_dim, n_classes,
                compute_dtype=jnp.bfloat16):
    """Pad to MXU/lane-friendly sizes, fuse the mu/var heads, cast matmul weights."""
    H_pad = _round_up(hidden_dim, 128)
    L_pad = _round_up(latent_dim, 128)
    C_pad = _round_up(n_classes, 128)

    def pad2(a, rows, cols):
        return jnp.pad(a, ((0, rows - a.shape[0]), (0, cols - a.shape[1])))

    w_head = jnp.concatenate(
        [pad2(params["w_mu"], H_pad, L_pad), pad2(params["w_var"], H_pad, L_pad)],
        axis=1)
    b_head = jnp.concatenate(
        [pad2(params["b_mu"], 1, L_pad), pad2(params["b_var"], 1, L_pad)], axis=1)

    return {
        # x matmul keeps the real input_dim as K (no feature padding needed).
        "w_enc_x": pad2(params["w_enc_x"], input_dim, H_pad).astype(compute_dtype),
        "w_enc_c": pad2(params["w_enc_c"], C_pad, H_pad).astype(compute_dtype),
        "b_enc": pad2(params["b_enc"], 1, H_pad),
        "w_head": w_head.astype(compute_dtype),
        "b_head": b_head,
        "w_dec1_z": pad2(params["w_dec1_z"], L_pad, H_pad).astype(compute_dtype),
        "w_dec1_c": pad2(params["w_dec1_c"], C_pad, H_pad).astype(compute_dtype),
        "b_dec1": pad2(params["b_dec1"], 1, H_pad),
        # Output matmul keeps the real input_dim as N (bf16 stores, unpadded).
        "w_dec2": pad2(params["w_dec2"], H_pad, input_dim).astype(compute_dtype),
        "b_dec2": pad2(params["b_dec2"], 1, input_dim),
    }


# --------------------------------------------------------------------------- #
# Pure-JAX reference (mirrors the PyTorch semantics)
# --------------------------------------------------------------------------- #
def _reference_forward(x, c1, eps, params, matmul_dtype=jnp.float32):
    md = matmul_dtype

    def mm(a, w):
        return jnp.dot(a.astype(md), w.astype(md),
                       preferred_element_type=jnp.float32)

    hidden = jax.nn.relu(mm(x, params["w_enc_x"]) + c1 @ params["w_enc_c"]
                         + params["b_enc"])
    mu = mm(hidden, params["w_mu"]) + params["b_mu"]
    log_var = mm(hidden, params["w_var"]) + params["b_var"]
    z = eps * jnp.exp(log_var / 2.0) + mu
    h2 = jax.nn.relu(mm(z, params["w_dec1_z"]) + c1 @ params["w_dec1_c"]
                     + params["b_dec1"])
    gen = jax.nn.sigmoid(mm(h2, params["w_dec2"]) + params["b_dec2"])
    return gen, mu, log_var


# --------------------------------------------------------------------------- #
# Test harness
# --------------------------------------------------------------------------- #
if __name__ == "__main__":
    # Small MNIST-like config.
    B, input_dim, hidden_dim, latent_dim, n_classes = 4, 784, 256, 20, 10

    key = jax.random.PRNGKey(0)
    k_par, k_x, k_c, k_eps = jax.random.split(key, 4)

    params = init_params(k_par, input_dim, hidden_dim, latent_dim, n_classes)
    packed = pack_params(params, input_dim=input_dim, hidden_dim=hidden_dim,
                         latent_dim=latent_dim, n_classes=n_classes)

    x = jax.random.uniform(k_x, (B, input_dim), jnp.float32)         # flattened image
    labels = jax.random.randint(k_c, (B,), 0, n_classes)
    c1 = jax.nn.one_hot(labels, n_classes, dtype=jnp.float32)        # one-hot condition
    eps = jax.random.normal(k_eps, (B, latent_dim), jnp.float32)     # torch.randn_like(std)

    gen, mu, log_var = cvae_forward(x, c1, eps, packed)
    jax.block_until_ready((gen, mu, log_var))

    assert gen.shape == (B, input_dim)
    assert mu.shape == (B, latent_dim) and log_var.shape == (B, latent_dim)

    gen_f32 = gen.astype(jnp.float32)

    # Check against a reference that uses bf16 matmul operands (gen is stored bf16).
    gen_q, mu_q, lv_q = _reference_forward(x, c1, eps, params,
                                           matmul_dtype=jnp.bfloat16)
    assert jnp.allclose(gen_f32, gen_q, atol=1e-2), "generated_x mismatch (bf16 ref)"
    assert jnp.allclose(mu, mu_q, atol=5e-3), "z_mu mismatch (bf16 ref)"
    assert jnp.allclose(log_var, lv_q, atol=5e-3), "z_var mismatch (bf16 ref)"

    # Loose check against the pure-f32 reference (PyTorch semantics).
    gen_r, mu_r, lv_r = _reference_forward(x, c1, eps, params,
                                           matmul_dtype=jnp.float32)
    assert jnp.allclose(gen_f32, gen_r, atol=5e-2), "generated_x mismatch (f32 ref)"
    assert jnp.allclose(mu, mu_r, atol=5e-2), "z_mu mismatch (f32 ref)"
    assert jnp.allclose(log_var, lv_r, atol=5e-2), "z_var mismatch (f32 ref)"

    print("KERNEL_OK")
</pallas_src>

<mosaic_0001>
module attributes {stable_mosaic.version = 11 : i64} {
  func.func @_cvae_kernel(%arg0: i32, %arg1: memref<8x784xf32, #tpu.memory_space<vmem>>, %arg2: memref<8x128xbf16, #tpu.memory_space<vmem>>, %arg3: memref<8x128xbf16, #tpu.memory_space<vmem>>, %arg4: memref<784x256xbf16, #tpu.memory_space<vmem>>, %arg5: memref<128x256xbf16, #tpu.memory_space<vmem>>, %arg6: memref<1x256xf32, #tpu.memory_space<vmem>>, %arg7: memref<256x256xbf16, #tpu.memory_space<vmem>>, %arg8: memref<1x256xf32, #tpu.memory_space<vmem>>, %arg9: memref<128x256xbf16, #tpu.memory_space<vmem>>, %arg10: memref<128x256xbf16, #tpu.memory_space<vmem>>, %arg11: memref<1x256xf32, #tpu.memory_space<vmem>>, %arg12: memref<256x784xbf16, #tpu.memory_space<vmem>>, %arg13: memref<1x784xf32, #tpu.memory_space<vmem>>, %arg14: memref<8x784xbf16, #tpu.memory_space<vmem>>, %arg15: memref<8x256xf32, #tpu.memory_space<vmem>>) attributes {dimension_semantics = [#tpu.dimension_semantics<parallel>], iteration_bounds = array<i64: 1>, scalar_prefetch = 0 : i64, scratch_operands = 0 : i64, tpu.core_type = #tpu.core_type<tc>, window_params = [{transform_indices = @transform_0, window_bounds = array<i64: 8, 784>}, {transform_indices = @transform_1, window_bounds = array<i64: 8, 128>}, {transform_indices = @transform_2, window_bounds = array<i64: 8, 128>}, {pipeline_mode = #tpu.pipeline_mode<synchronous>, transform_indices = @transform_3, window_bounds = array<i64: 784, 256>}, {pipeline_mode = #tpu.pipeline_mode<synchronous>, transform_indices = @transform_4, window_bounds = array<i64: 128, 256>}, {pipeline_mode = #tpu.pipeline_mode<synchronous>, transform_indices = @transform_5, window_bounds = array<i64: 1, 256>}, {pipeline_mode = #tpu.pipeline_mode<synchronous>, transform_indices = @transform_6, window_bounds = array<i64: 256, 256>}, {pipeline_mode = #tpu.pipeline_mode<synchronous>, transform_indices = @transform_7, window_bounds = array<i64: 1, 256>}, {pipeline_mode = #tpu.pipeline_mode<synchronous>, transform_indices = @transform_8, window_bounds = array<i64: 128, 256>}, {pipeline_mode = #tpu.pipeline_mode<synchronous>, transform_indices = @transform_9, window_bounds = array<i64: 128, 256>}, {pipeline_mode = #tpu.pipeline_mode<synchronous>, transform_indices = @transform_10, window_bounds = array<i64: 1, 256>}, {pipeline_mode = #tpu.pipeline_mode<synchronous>, transform_indices = @transform_11, window_bounds = array<i64: 256, 784>}, {pipeline_mode = #tpu.pipeline_mode<synchronous>, transform_indices = @transform_12, window_bounds = array<i64: 1, 784>}, {transform_indices = @transform_13, window_bounds = array<i64: 8, 784>}, {transform_indices = @transform_14, window_bounds = array<i64: 8, 256>}]} {
    %c0 = arith.constant 0 : index
    %c0_0 = arith.constant 0 : index
    %0 = vector.load %arg1[%c0, %c0_0] : memref<8x784xf32, #tpu.memory_space<vmem>>, vector<8x784xf32>
    %1 = arith.truncf %0 : vector<8x784xf32> to vector<8x784xbf16>
    %c0_1 = arith.constant 0 : index
    %c0_2 = arith.constant 0 : index
    %2 = vector.load %arg2[%c0_1, %c0_2] : memref<8x128xbf16, #tpu.memory_space<vmem>>, vector<8x128xbf16>
    %c0_3 = arith.constant 0 : index
    %c0_4 = arith.constant 0 : index
    %3 = vector.load %arg4[%c0_3, %c0_4] : memref<784x256xbf16, #tpu.memory_space<vmem>>, vector<784x256xbf16>
    %cst = arith.constant dense<0.000000e+00> : vector<8x256xf32>
    %4 = tpu.matmul %1, %3, %cst {dimension_numbers = #tpu.dot_dimension_numbers<[1], [0], [0], [1], [0, 0, 1, 1], [], []>} : vector<8x784xbf16>, vector<784x256xbf16>, vector<8x256xf32> -> vector<8x256xf32>
    %c0_5 = arith.constant 0 : index
    %c0_6 = arith.constant 0 : index
    %5 = vector.load %arg5[%c0_5, %c0_6] : memref<128x256xbf16, #tpu.memory_space<vmem>>, vector<128x256xbf16>
    %cst_7 = arith.constant dense<0.000000e+00> : vector<8x256xf32>
    %6 = tpu.matmul %2, %5, %cst_7 {dimension_numbers = #tpu.dot_dimension_numbers<[1], [0], [0], [1], [0, 0, 1, 1], [], []>} : vector<8x128xbf16>, vector<128x256xbf16>, vector<8x256xf32> -> vector<8x256xf32>
    %7 = arith.addf %4, %6 : vector<8x256xf32>
    %c0_8 = arith.constant 0 : index
    %c0_9 = arith.constant 0 : index
    %8 = vector.load %arg6[%c0_8, %c0_9] : memref<1x256xf32, #tpu.memory_space<vmem>>, vector<1x256xf32>
    %9 = vector.broadcast %8 : vector<1x256xf32> to vector<8x256xf32>
    %10 = arith.addf %7, %9 : vector<8x256xf32>
    %cst_10 = arith.constant 0.000000e+00 : f32
    %11 = vector.broadcast %cst_10 : f32 to vector<8x256xf32>
    %12 = arith.maximumf %10, %11 : vector<8x256xf32>
    %13 = arith.truncf %12 : vector<8x256xf32> to vector<8x256xbf16>
    %c0_11 = arith.constant 0 : index
    %c0_12 = arith.constant 0 : index
    %14 = vector.load %arg7[%c0_11, %c0_12] : memref<256x256xbf16, #tpu.memory_space<vmem>>, vector<256x256xbf16>
    %cst_13 = arith.constant dense<0.000000e+00> : vector<8x256xf32>
    %15 = tpu.matmul %13, %14, %cst_13 {dimension_numbers = #tpu.dot_dimension_numbers<[1], [0], [0], [1], [0, 0, 1, 1], [], []>} : vector<8x256xbf16>, vector<256x256xbf16>, vector<8x256xf32> -> vector<8x256xf32>
    %c0_14 = arith.constant 0 : index
    %c0_15 = arith.constant 0 : index
    %16 = vector.load %arg8[%c0_14, %c0_15] : memref<1x256xf32, #tpu.memory_space<vmem>>, vector<1x256xf32>
    %17 = vector.broadcast %16 : vector<1x256xf32> to vector<8x256xf32>
    %18 = arith.addf %15, %17 : vector<8x256xf32>
    %19 = vector.extract_strided_slice %18 {offsets = [0, 0], sizes = [8, 128], strides = [1, 1]} : vector<8x256xf32> to vector<8x128xf32>
    %20 = vector.extract_strided_slice %18 {offsets = [0, 128], sizes = [8, 128], strides = [1, 1]} : vector<8x256xf32> to vector<8x128xf32>
    %c0_16 = arith.constant 0 : index
    %c0_17 = arith.constant 0 : index
    %21 = vector.load %arg3[%c0_16, %c0_17] : memref<8x128xbf16, #tpu.memory_space<vmem>>, vector<8x128xbf16>
    %22 = arith.extf %21 : vector<8x128xbf16> to vector<8x128xf32>
    %cst_18 = arith.constant 5.000000e-01 : f32
    %23 = vector.broadcast %cst_18 : f32 to vector<8x128xf32>
    %24 = arith.mulf %20, %23 : vector<8x128xf32>
    %25 = math.exp %24 : vector<8x128xf32>
    %26 = arith.mulf %22, %25 : vector<8x128xf32>
    %27 = arith.addf %26, %19 : vector<8x128xf32>
    %28 = arith.truncf %27 : vector<8x128xf32> to vector<8x128xbf16>
    %c0_19 = arith.constant 0 : index
    %c0_20 = arith.constant 0 : index
    %29 = vector.load %arg9[%c0_19, %c0_20] : memref<128x256xbf16, #tpu.memory_space<vmem>>, vector<128x256xbf16>
    %cst_21 = arith.constant dense<0.000000e+00> : vector<8x256xf32>
    %30 = tpu.matmul %28, %29, %cst_21 {dimension_numbers = #tpu.dot_dimension_numbers<[1], [0], [0], [1], [0, 0, 1, 1], [], []>} : vector<8x128xbf16>, vector<128x256xbf16>, vector<8x256xf32> -> vector<8x256xf32>
    %c0_22 = arith.constant 0 : index
    %c0_23 = arith.constant 0 : index
    %31 = vector.load %arg10[%c0_22, %c0_23] : memref<128x256xbf16, #tpu.memory_space<vmem>>, vector<128x256xbf16>
    %cst_24 = arith.constant dense<0.000000e+00> : vector<8x256xf32>
    %32 = tpu.matmul %2, %31, %cst_24 {dimension_numbers = #tpu.dot_dimension_numbers<[1], [0], [0], [1], [0, 0, 1, 1], [], []>} : vector<8x128xbf16>, vector<128x256xbf16>, vector<8x256xf32> -> vector<8x256xf32>
    %33 = arith.addf %30, %32 : vector<8x256xf32>
    %c0_25 = arith.constant 0 : index
    %c0_26 = arith.constant 0 : index
    %34 = vector.load %arg11[%c0_25, %c0_26] : memref<1x256xf32, #tpu.memory_space<vmem>>, vector<1x256xf32>
    %35 = vector.broadcast %34 : vector<1x256xf32> to vector<8x256xf32>
    %36 = arith.addf %33, %35 : vector<8x256xf32>
    %cst_27 = arith.constant 0.000000e+00 : f32
    %37 = vector.broadcast %cst_27 : f32 to vector<8x256xf32>
    %38 = arith.maximumf %36, %37 : vector<8x256xf32>
    %39 = arith.truncf %38 : vector<8x256xf32> to vector<8x256xbf16>
    %c0_28 = arith.constant 0 : index
    %c0_29 = arith.constant 0 : index
    %40 = vector.load %arg12[%c0_28, %c0_29] : memref<256x784xbf16, #tpu.memory_space<vmem>>, vector<256x784xbf16>
    %cst_30 = arith.constant dense<0.000000e+00> : vector<8x784xf32>
    %41 = tpu.matmul %39, %40, %cst_30 {dimension_numbers = #tpu.dot_dimension_numbers<[1], [0], [0], [1], [0, 0, 1, 1], [], []>} : vector<8x256xbf16>, vector<256x784xbf16>, vector<8x784xf32> -> vector<8x784xf32>
    %c0_31 = arith.constant 0 : index
    %c0_32 = arith.constant 0 : index
    %42 = vector.load %arg13[%c0_31, %c0_32] : memref<1x784xf32, #tpu.memory_space<vmem>>, vector<1x784xf32>
    %43 = vector.broadcast %42 : vector<1x784xf32> to vector<8x784xf32>
    %44 = arith.addf %41, %43 : vector<8x784xf32>
    %45 = arith.negf %44 : vector<8x784xf32>
    %46 = math.exp %45 : vector<8x784xf32>
    %cst_33 = arith.constant 1.000000e+00 : f32
    %47 = vector.broadcast %cst_33 : f32 to vector<8x784xf32>
    %48 = arith.addf %47, %46 : vector<8x784xf32>
    %49 = arith.divf %47, %48 : vector<8x784xf32>
    %50 = arith.truncf %49 : vector<8x784xf32> to vector<8x784xbf16>
    %c0_34 = arith.constant 0 : index
    %c0_35 = arith.constant 0 : index
    %51 = vector.load %arg14[%c0_34, %c0_35] : memref<8x784xbf16, #tpu.memory_space<vmem>>, vector<8x784xbf16>
    tpu.vector_store %arg14[%c0_34, %c0_35], %50 {strides = array<i32>} : memref<8x784xbf16, #tpu.memory_space<vmem>>, vector<8x784xbf16>,
    %c0_36 = arith.constant 0 : index
    %c0_37 = arith.constant 0 : index
    %52 = vector.load %arg15[%c0_36, %c0_37] : memref<8x256xf32, #tpu.memory_space<vmem>>, vector<8x256xf32>
    tpu.vector_store %arg15[%c0_36, %c0_37], %18 {strides = array<i32>} : memref<8x256xf32, #tpu.memory_space<vmem>>, vector<8x256xf32>,
    return
  }
  func.func @transform_0(%arg0: i32) -> (i32, i32) {
    %c0_i32 = arith.constant 0 : i32
    %c0_i32_0 = arith.constant 0 : i32
    return %arg0, %c0_i32 : i32, i32
  }
  func.func @transform_1(%arg0: i32) -> (i32, i32) {
    %c0_i32 = arith.constant 0 : i32
    %c0_i32_0 = arith.constant 0 : i32
    return %arg0, %c0_i32 : i32, i32
  }
  func.func @transform_2(%arg0: i32) -> (i32, i32) {
    %c0_i32 = arith.constant 0 : i32
    %c0_i32_0 = arith.constant 0 : i32
    return %arg0, %c0_i32 : i32, i32
  }
  func.func @transform_3(%arg0: i32) -> (i32, i32) {
    %c0_i32 = arith.constant 0 : i32
    %c0_i32_0 = arith.constant 0 : i32
    %c0_i32_1 = arith.constant 0 : i32
    return %c0_i32, %c0_i32_0 : i32, i32
  }
  func.func @transform_4(%arg0: i32) -> (i32, i32) {
    %c0_i32 = arith.constant 0 : i32
    %c0_i32_0 = arith.constant 0 : i32
    %c0_i32_1 = arith.constant 0 : i32
    return %c0_i32, %c0_i32_0 : i32, i32
  }
  func.func @transform_5(%arg0: i32) -> (i32, i32) {
    %c0_i32 = arith.constant 0 : i32
    %c0_i32_0 = arith.constant 0 : i32
    %c0_i32_1 = arith.constant 0 : i32
    return %c0_i32, %c0_i32_0 : i32, i32
  }
  func.func @transform_6(%arg0: i32) -> (i32, i32) {
    %c0_i32 = arith.constant 0 : i32
    %c0_i32_0 = arith.constant 0 : i32
    %c0_i32_1 = arith.constant 0 : i32
    return %c0_i32, %c0_i32_0 : i32, i32
  }
  func.func @transform_7(%arg0: i32) -> (i32, i32) {
    %c0_i32 = arith.constant 0 : i32
    %c0_i32_0 = arith.constant 0 : i32
    %c0_i32_1 = arith.constant 0 : i32
    return %c0_i32, %c0_i32_0 : i32, i32
  }
  func.func @transform_8(%arg0: i32) -> (i32, i32) {
    %c0_i32 = arith.constant 0 : i32
    %c0_i32_0 = arith.constant 0 : i32
    %c0_i32_1 = arith.constant 0 : i32
    return %c0_i32, %c0_i32_0 : i32, i32
  }
  func.func @transform_9(%arg0: i32) -> (i32, i32) {
    %c0_i32 = arith.constant 0 : i32
    %c0_i32_0 = arith.constant 0 : i32
    %c0_i32_1 = arith.constant 0 : i32
    return %c0_i32, %c0_i32_0 : i32, i32
  }
  func.func @transform_10(%arg0: i32) -> (i32, i32) {
    %c0_i32 = arith.constant 0 : i32
    %c0_i32_0 = arith.constant 0 : i32
    %c0_i32_1 = arith.constant 0 : i32
    return %c0_i32, %c0_i32_0 : i32, i32
  }
  func.func @transform_11(%arg0: i32) -> (i32, i32) {
    %c0_i32 = arith.constant 0 : i32
    %c0_i32_0 = arith.constant 0 : i32
    %c0_i32_1 = arith.constant 0 : i32
    return %c0_i32, %c0_i32_0 : i32, i32
  }
  func.func @transform_12(%arg0: i32) -> (i32, i32) {
    %c0_i32 = arith.constant 0 : i32
    %c0_i32_0 = arith.constant 0 : i32
    %c0_i32_1 = arith.constant 0 : i32
    return %c0_i32, %c0_i32_0 : i32, i32
  }
  func.func @transform_13(%arg0: i32) -> (i32, i32) {
    %c0_i32 = arith.constant 0 : i32
    %c0_i32_0 = arith.constant 0 : i32
    return %arg0, %c0_i32 : i32, i32
  }
  func.func @transform_14(%arg0: i32) -> (i32, i32) {
    %c0_i32 = arith.constant 0 : i32
    %c0_i32_0 = arith.constant 0 : i32
    return %arg0, %c0_i32 : i32, i32
  }
}

</mosaic_0001>

<llo_original>
// kernel: cvae_forward.1
$region0: #{cvae_forward.1}
  #allocation0 [shape = 'u32[]', space=smem, size = 0x4, offset = 0x4, fixed_abs, tag = 'smem constant byte address 0x4 - core index']
  #allocation1 [shape = 'u32[144,128]{1,0:T(1,128)}', space=vmem, size = 0x12000, scoped, tag = 'internal scratch']
  %s0 = inlined_call_operand.vmem [shape: f32[8,784], index: 0, kind: input, shape index: {}]
  %s1 = inlined_call_operand.vmem [shape: bf16[8,128], index: 1, kind: input, shape index: {}]
  %s2 = inlined_call_operand.vmem [shape: bf16[8,128], index: 2, kind: input, shape index: {}]
  %s3 = inlined_call_operand.vmem [shape: bf16[784,256], index: 3, kind: input, shape index: {}]
  %s4 = inlined_call_operand.vmem [shape: bf16[128,256], index: 4, kind: input, shape index: {}]
  %s5 = inlined_call_operand.vmem [shape: f32[1,256], index: 5, kind: input, shape index: {}]
  %s6 = inlined_call_operand.vmem [shape: bf16[256,256], index: 6, kind: input, shape index: {}]
  %s7 = inlined_call_operand.vmem [shape: f32[1,256], index: 7, kind: input, shape index: {}]
  %s8 = inlined_call_operand.vmem [shape: bf16[128,256], index: 8, kind: input, shape index: {}]
  %s9 = inlined_call_operand.vmem [shape: bf16[128,256], index: 9, kind: input, shape index: {}]
  %s10 = inlined_call_operand.vmem [shape: f32[1,256], index: 10, kind: input, shape index: {}]
  %s11 = inlined_call_operand.vmem [shape: bf16[256,784], index: 11, kind: input, shape index: {}]
  %s12 = inlined_call_operand.vmem [shape: f32[1,784], index: 12, kind: input, shape index: {}]
  %s13 = inlined_call_operand.vmem [shape: bf16[8,784], index: 13, kind: output, shape index: {0}]
  %s14 = inlined_call_operand.vmem [shape: f32[8,256], index: 14, kind: output, shape index: {1}]
  %15 = xla_tuple %s13, %s14
  %s16 = sld [smem:[#allocation0]]
  $region70: #{cvae_forward.1} parent=0
    _
  %s18 = ssub.s32 1, %s16
  %s19 = scalar_select 0, %s18, %s16
  // Predicated region
  $region2: #{cvae_forward.1} parent=0 // pred_check
    _
  $region3: #{cvae_forward.1} parent=0 // pred_check_branch
    %21 = sbr.rel (0) target = $region5
  $region4: #{cvae_forward.1} parent=0 // pred_region
    _
  $region5: #{cvae_forward.1} parent=0 // pred_fallthru
    _
  // Predicated region
  $region6: #{cvae_forward.1} parent=0 // pred_check
    _
  $region7: #{cvae_forward.1} parent=0 // pred_check_branch
    %23 = sbr.rel (0) target = $region9
  $region8: #{cvae_forward.1} parent=0 // pred_region
    _
  $region9: #{cvae_forward.1} parent=0 // pred_fallthru
    _
  // Predicated region
  $region10: #{cvae_forward.1} parent=0 // pred_check
    _
  $region11: #{cvae_forward.1} parent=0 // pred_check_branch
    %25 = sbr.rel (0) target = $region13
  $region12: #{cvae_forward.1} parent=0 // pred_region
    _
  $region13: #{cvae_forward.1} parent=0 // pred_fallthru
    _
  // Predicated region
  $region14: #{cvae_forward.1} parent=0 // pred_check
    _
  $region15: #{cvae_forward.1} parent=0 // pred_check_branch
    %27 = sbr.rel (0) target = $region17
  $region16: #{cvae_forward.1} parent=0 // pred_region
    _
  $region17: #{cvae_forward.1} parent=0 // pred_fallthru
    _
  // Predicated region
  $region18: #{cvae_forward.1} parent=0 // pred_check
    _
  $region19: #{cvae_forward.1} parent=0 // pred_check_branch
    %29 = sbr.rel (0) target = $region21
  $region20: #{cvae_forward.1} parent=0 // pred_region
    _
  $region21: #{cvae_forward.1} parent=0 // pred_fallthru
    _
  // Predicated region
  $region22: #{cvae_forward.1} parent=0 // pred_check
    _
  $region23: #{cvae_forward.1} parent=0 // pred_check_branch
    %31 = sbr.rel (0) target = $region25
  $region24: #{cvae_forward.1} parent=0 // pred_region
    _
  $region25: #{cvae_forward.1} parent=0 // pred_fallthru
    _
  // Predicated region
  $region26: #{cvae_forward.1} parent=0 // pred_check
    _
  $region27: #{cvae_forward.1} parent=0 // pred_check_branch
    %33 = sbr.rel (0) target = $region29
  $region28: #{cvae_forward.1} parent=0 // pred_region
    _
  $region29: #{cvae_forward.1} parent=0 // pred_fallthru
    _
  // Predicated region
  $region30: #{cvae_forward.1} parent=0 // pred_check
    _
  $region31: #{cvae_forward.1} parent=0 // pred_check_branch
    %35 = sbr.rel (0) target = $region33
  $region32: #{cvae_forward.1} parent=0 // pred_region
    _
  $region33: #{cvae_forward.1} parent=0 // pred_fallthru
    _
  // Predicated region
  $region34: #{cvae_forward.1} parent=0 // pred_check
    _
  $region35: #{cvae_forward.1} parent=0 // pred_check_branch
    %37 = sbr.rel (0) target = $region37
  $region36: #{cvae_forward.1} parent=0 // pred_region
    _
  $region37: #{cvae_forward.1} parent=0 // pred_fallthru
    _
  // Predicated region
  $region38: #{cvae_forward.1} parent=0 // pred_check
    _
  $region39: #{cvae_forward.1} parent=0 // pred_check_branch
    %39 = sbr.rel (0) target = $region41
  $region40: #{cvae_forward.1} parent=0 // pred_region
    _
  $region41: #{cvae_forward.1} parent=0 // pred_fallthru
    _
  // Predicated region
  $region42: #{cvae_forward.1} parent=0 // pred_check
    _
  $region43: #{cvae_forward.1} parent=0 // pred_check_branch
    %41 = sbr.rel (0) target = $region45
  $region44: #{cvae_forward.1} parent=0 // pred_region
    _
  $region45: #{cvae_forward.1} parent=0 // pred_fallthru
    _
  // Predicated region
  $region46: #{cvae_forward.1} parent=0 // pred_check
    _
  $region47: #{cvae_forward.1} parent=0 // pred_check_branch
    %43 = sbr.rel (0) target = $region49
  $region48: #{cvae_forward.1} parent=0 // pred_region
    _
  $region49: #{cvae_forward.1} parent=0 // pred_fallthru
    _
  // Predicated region
  $region50: #{cvae_forward.1} parent=0 // pred_check
    _
  $region51: #{cvae_forward.1} parent=0 // pred_check_branch
    %45 = sbr.rel (0) target = $region53
  $region52: #{cvae_forward.1} parent=0 // pred_region
    _
  $region53: #{cvae_forward.1} parent=0 // pred_fallthru
    _
  %v47 = vld [vmem:[%s0] sm:$0xff]
  %v48 = vld [vmem:[%s0 + $0x8] sm:$0xff]
  %v49 = vld [vmem:[%s0 + $0x10] sm:$0xff]
  %v50 = vld [vmem:[%s0 + $0x18] sm:$0xff]
  %v51 = vld [vmem:[%s0 + $0x20] sm:$0xff]
  %v52 = vld [vmem:[%s0 + $0x28] sm:$0xff]
  %v53 = vld [vmem:[%s0 + $0x30] sm:$0xff]
  %v54 = vpack.c.bf16 %v47, %v47
  %v55 = vpack.c.bf16 %v48, %v48
  %v56 = vpack.c.bf16 %v49, %v49
  %v57 = vpack.c.bf16 %v50, %v50
  %v58 = vpack.c.bf16 %v51, %v51
  %v59 = vpack.c.bf16 %v52, %v52
  %v60 = vpack.c.bf16 %v53, %v53
  %v61 = vld [vmem:[%s1] sm:$0xf]
  %v62 = vld [vmem:[%s3] sm:$0xff]
  %v63 = vld [vmem:[%s3 + $0x8] sm:$0xff]
  %v64 = vld [vmem:[%s3 + $0x10] sm:$0xff]
  %v65 = vld [vmem:[%s3 + $0x18] sm:$0xff]
  %v66 = vld [vmem:[%s3 + $0x20] sm:$0xff]
  %v67 = vld [vmem:[%s3 + $0x28] sm:$0xff]
  %v68 = vld [vmem:[%s3 + $0x30] sm:$0xff]
  %v69 = vld [vmem:[%s3 + $0x38] sm:$0xff]
  %v70 = vld [vmem:[%s3 + $0x40] sm:$0xff]
  %v71 = vld [vmem:[%s3 + $0x48] sm:$0xff]
  %v72 = vld [vmem:[%s3 + $0x50] sm:$0xff]
  %v73 = vld [vmem:[%s3 + $0x58] sm:$0xff]
  %v74 = vld [vmem:[%s3 + $0x60] sm:$0xff]
  %v75 = vld [vmem:[%s3 + $0x68] sm:$0xff]
  %v76 = vld [vmem:[%s3 + $0x70] sm:$0xff]
  %v77 = vld [vmem:[%s3 + $0x78] sm:$0xff]
  %v78 = vld [vmem:[%s3 + $0x80] sm:$0xff]
  %v79 = vld [vmem:[%s3 + $0x88] sm:$0xff]
  %v80 = vld [vmem:[%s3 + $0x90] sm:$0xff]
  %v81 = vld [vmem:[%s3 + $0x98] sm:$0xff]
  %v82 = vld [vmem:[%s3 + $0xa0] sm:$0xff]
  %v83 = vld [vmem:[%s3 + $0xa8] sm:$0xff]
  %v84 = vld [vmem:[%s3 + $0xb0] sm:$0xff]
  %v85 = vld [vmem:[%s3 + $0xb8] sm:$0xff]
  %v86 = vld [vmem:[%s3 + $0xc0] sm:$0xff]
  %v87 = vld [vmem:[%s3 + $0xc8] sm:$0xff]
  %v88 = vld [vmem:[%s3 + $0xd0] sm:$0xff]
  %v89 = vld [vmem:[%s3 + $0xd8] sm:$0xff]
  %v90 = vld [vmem:[%s3 + $0xe0] sm:$0xff]
  %v91 = vld [vmem:[%s3 + $0xe8] sm:$0xff]
  %v92 = vld [vmem:[%s3 + $0xf0] sm:$0xff]
  %v93 = vld [vmem:[%s3 + $0xf8] sm:$0xff]
  %v94 = vld [vmem:[%s3 + $0x100] sm:$0xff]
  %v95 = vld [vmem:[%s3 + $0x108] sm:$0xff]
  %v96 = vld [vmem:[%s3 + $0x110] sm:$0xff]
  %v97 = vld [vmem:[%s3 + $0x118] sm:$0xff]
  %v98 = vld [vmem:[%s3 + $0x120] sm:$0xff]
  %v99 = vld [vmem:[%s3 + $0x128] sm:$0xff]
  %v100 = vld [vmem:[%s3 + $0x130] sm:$0xff]
  %v101 = vld [vmem:[%s3 + $0x138] sm:$0xff]
  %v102 = vld [vmem:[%s3 + $0x140] sm:$0xff]
  %v103 = vld [vmem:[%s3 + $0x148] sm:$0xff]
  %v104 = vld [vmem:[%s3 + $0x150] sm:$0xff]
  %v105 = vld [vmem:[%s3 + $0x158] sm:$0xff]
  %v106 = vld [vmem:[%s3 + $0x160] sm:$0xff]
  %v107 = vld [vmem:[%s3 + $0x168] sm:$0xff]
  %v108 = vld [vmem:[%s3 + $0x170] sm:$0xff]
  %v109 = vld [vmem:[%s3 + $0x178] sm:$0xff]
  %v110 = vld [vmem:[%s3 + $0x180] sm:$0xff]
  %v111 = vld [vmem:[%s3 + $0x188] sm:$0xff]
  %v112 = vld [vmem:[%s3 + $0x190] sm:$0xff]
  %v113 = vld [vmem:[%s3 + $0x198] sm:$0xff]
  %v114 = vld [vmem:[%s3 + $0x1a0] sm:$0xff]
  %v115 = vld [vmem:[%s3 + $0x1a8] sm:$0xff]
  %v116 = vld [vmem:[%s3 + $0x1b0] sm:$0xff]
  %v117 = vld [vmem:[%s3 + $0x1b8] sm:$0xff]
  %v118 = vld [vmem:[%s3 + $0x1c0] sm:$0xff]
  %v119 = vld [vmem:[%s3 + $0x1c8] sm:$0xff]
  %v120 = vld [vmem:[%s3 + $0x1d0] sm:$0xff]
  %v121 = vld [vmem:[%s3 + $0x1d8] sm:$0xff]
  %v122 = vld [vmem:[%s3 + $0x1e0] sm:$0xff]
  %v123 = vld [vmem:[%s3 + $0x1e8] sm:$0xff]
  %v124 = vld [vmem:[%s3 + $0x1f0] sm:$0xff]
  %v125 = vld [vmem:[%s3 + $0x1f8] sm:$0xff]
  %v126 = vld [vmem:[%s3 + $0x200] sm:$0xff]
  %v127 = vld [vmem:[%s3 + $0x208] sm:$0xff]
  %v128 = vld [vmem:[%s3 + $0x210] sm:$0xff]
  %v129 = vld [vmem:[%s3 + $0x218] sm:$0xff]
  %v130 = vld [vmem:[%s3 + $0x220] sm:$0xff]
  %v131 = vld [vmem:[%s3 + $0x228] sm:$0xff]
  %v132 = vld [vmem:[%s3 + $0x230] sm:$0xff]
  %v133 = vld [vmem:[%s3 + $0x238] sm:$0xff]
  %v134 = vld [vmem:[%s3 + $0x240] sm:$0xff]
  %v135 = vld [vmem:[%s3 + $0x248] sm:$0xff]
  %v136 = vld [vmem:[%s3 + $0x250] sm:$0xff]
  %v137 = vld [vmem:[%s3 + $0x258] sm:$0xff]
  %v138 = vld [vmem:[%s3 + $0x260] sm:$0xff]
  %v139 = vld [vmem:[%s3 + $0x268] sm:$0xff]
  %v140 = vld [vmem:[%s3 + $0x270] sm:$0xff]
  %v141 = vld [vmem:[%s3 + $0x278] sm:$0xff]
  %v142 = vld [vmem:[%s3 + $0x280] sm:$0xff]
  %v143 = vld [vmem:[%s3 + $0x288] sm:$0xff]
  %v144 = vld [vmem:[%s3 + $0x290] sm:$0xff]
  %v145 = vld [vmem:[%s3 + $0x298] sm:$0xff]
  %v146 = vld [vmem:[%s3 + $0x2a0] sm:$0xff]
  %v147 = vld [vmem:[%s3 + $0x2a8] sm:$0xff]
  %v148 = vld [vmem:[%s3 + $0x2b0] sm:$0xff]
  %v149 = vld [vmem:[%s3 + $0x2b8] sm:$0xff]
  %v150 = vld [vmem:[%s3 + $0x2c0] sm:$0xff]
  %v151 = vld [vmem:[%s3 + $0x2c8] sm:$0xff]
  %v152 = vld [vmem:[%s3 + $0x2d0] sm:$0xff]
  %v153 = vld [vmem:[%s3 + $0x2d8] sm:$0xff]
  %v154 = vld [vmem:[%s3 + $0x2e0] sm:$0xff]
  %v155 = vld [vmem:[%s3 + $0x2e8] sm:$0xff]
  %v156 = vld [vmem:[%s3 + $0x2f0] sm:$0xff]
  %v157 = vld [vmem:[%s3 + $0x2f8] sm:$0xff]
  %v158 = vld [vmem:[%s3 + $0x300] sm:$0xff]
  %v159 = vld [vmem:[%s3 + $0x308] sm:$0xff]
  %v160 = vld [vmem:[%s4] sm:$0xff]
  %v161 = vld [vmem:[%s4 + $0x8] sm:$0xff]
  %v162 = vld [vmem:[%s4 + $0x10] sm:$0xff]
  %v163 = vld [vmem:[%s4 + $0x18] sm:$0xff]
  %v164 = vld [vmem:[%s4 + $0x20] sm:$0xff]
  %v165 = vld [vmem:[%s4 + $0x28] sm:$0xff]
  %v166 = vld [vmem:[%s4 + $0x30] sm:$0xff]
  %v167 = vld [vmem:[%s4 + $0x38] sm:$0xff]
  %v168 = vld [vmem:[%s4 + $0x40] sm:$0xff]
  %v169 = vld [vmem:[%s4 + $0x48] sm:$0xff]
  %v170 = vld [vmem:[%s4 + $0x50] sm:$0xff]
  %v171 = vld [vmem:[%s4 + $0x58] sm:$0xff]
  %v172 = vld [vmem:[%s4 + $0x60] sm:$0xff]
  %v173 = vld [vmem:[%s4 + $0x68] sm:$0xff]
  %v174 = vld [vmem:[%s4 + $0x70] sm:$0xff]
  %v175 = vld [vmem:[%s4 + $0x78] sm:$0xff]
  %v192 = vunpack.c.l.b16 %v160
  %v193 = vunpack.c.h.b16 %v160
  %v194 = vunpack.c.l.b16 %v161
  %v195 = vunpack.c.h.b16 %v161
  %v196 = vunpack.c.l.b16 %v162
  %v197 = vunpack.c.h.b16 %v162
  %v198 = vunpack.c.l.b16 %v163
  %v199 = vunpack.c.h.b16 %v163
  %v200 = vunpack.c.l.b16 %v164
  %v201 = vunpack.c.h.b16 %v164
  %v202 = vunpack.c.l.b16 %v165
  %v203 = vunpack.c.h.b16 %v165
  %v204 = vunpack.c.l.b16 %v166
  %v205 = vunpack.c.h.b16 %v166
  %v206 = vunpack.c.l.b16 %v167
  %v207 = vunpack.c.h.b16 %v167
  %v208 = vunpack.c.l.b16 %v168
  %v209 = vunpack.c.h.b16 %v168
  %v210 = vunpack.c.l.b16 %v169
  %v211 = vunpack.c.h.b16 %v169
  %v212 = vunpack.c.l.b16 %v170
  %v213 = vunpack.c.h.b16 %v170
  %v214 = vunpack.c.l.b16 %v171
  %v215 = vunpack.c.h.b16 %v171
  %v216 = vunpack.c.l.b16 %v172
  %v217 = vunpack.c.h.b16 %v172
  %v218 = vunpack.c.l.b16 %v173
  %v219 = vunpack.c.h.b16 %v173
  %v220 = vunpack.c.l.b16 %v174
  %v221 = vunpack.c.h.b16 %v174
  %v222 = vunpack.c.l.b16 %v175
  %v223 = vunpack.c.h.b16 %v175
  %v224 = vpack.c.b16 %v194, %v192
  %v225 = vpack.c.b16 %v195, %v193
  %v226 = vpack.c.b16 %v198, %v196
  %v227 = vpack.c.b16 %v199, %v197
  %v228 = vpack.c.b16 %v202, %v200
  %v229 = vpack.c.b16 %v203, %v201
  %v230 = vpack.c.b16 %v206, %v204
  %v231 = vpack.c.b16 %v207, %v205
  %v232 = vpack.c.b16 %v210, %v208
  %v233 = vpack.c.b16 %v211, %v209
  %v234 = vpack.c.b16 %v214, %v212
  %v235 = vpack.c.b16 %v215, %v213
  %v236 = vpack.c.b16 %v218, %v216
  %v237 = vpack.c.b16 %v219, %v217
  %v238 = vpack.c.b16 %v222, %v220
  %v239 = vpack.c.b16 %v223, %v221
  %256 = vmatprep.subr.bf16.mxu0 %v225
  %257 = vmatpush1.bf16.msra.mxu0 %v224
  %258 = vmatprep.subr.bf16.mxu0 %v227
  %259 = vmatpush1.bf16.msra.mxu0 %v226
  %260 = vmatprep.subr.bf16.mxu0 %v229
  %261 = vmatpush1.bf16.msra.mxu0 %v228
  %262 = vmatprep.subr.bf16.mxu0 %v231
  %263 = vmatpush1.bf16.msra.mxu0 %v230
  %264 = vmatprep.subr.bf16.mxu0 %v233
  %265 = vmatpush1.bf16.msra.mxu0 %v232
  %266 = vmatprep.subr.bf16.mxu0 %v235
  %267 = vmatpush1.bf16.msra.mxu0 %v234
  %268 = vmatprep.subr.bf16.mxu0 %v237
  %269 = vmatpush1.bf16.msra.mxu0 %v236
  %270 = vmatprep.subr.bf16.mxu0 %v239
  %271 = vmatpush1.bf16.msra.mxu0 %v238
  %272 = vmatprep.subr.bf16.mxu0 0
  %273 = vmatpush1.bf16.msra.mxu0 0
  %274 = vmatprep.subr.bf16.mxu0 0
  %275 = vmatpush1.bf16.msra.mxu0 0
  %276 = vmatprep.subr.bf16.mxu0 0
  %277 = vmatpush1.bf16.msra.mxu0 0
  %278 = vmatprep.subr.bf16.mxu0 0
  %279 = vmatpush1.bf16.msra.mxu0 0
  %280 = vmatprep.subr.bf16.mxu0 0
  %281 = vmatpush1.bf16.msra.mxu0 0
  %282 = vmatprep.subr.bf16.mxu0 0
  %283 = vmatpush1.bf16.msra.mxu0 0
  %284 = vmatprep.subr.bf16.mxu0 0
  %285 = vmatpush1.bf16.msra.mxu0 0
  %286 = vmatprep.subr.bf16.mxu0 0
  %287 = vmatpush1.bf16.msra.mxu0 0
  %288 = vmatprep.mubr.bf16.mxu0 0
  %289 = vmatmul.mubr.bf16.gmra.mrb[0].mxu0 %v61
  %v290 = vpop.f32.mrb[0].mxu0
  %v291 = vadd.f32 0.0, %v290
  %v292 = vpop.f32.mrb[0].mxu0
  %v293 = vadd.f32 0.0, %v292
  %v294 = vpop.f32.mrb[0].mxu0
  %v295 = vpop.f32.mrb[0].mxu0
  %296 = vdwg.mxu0
  %v395 = vunpack.c.l.b16 %v62
  %v396 = vunpack.c.h.b16 %v62
  %v397 = vunpack.c.l.b16 %v63
  %v398 = vunpack.c.h.b16 %v63
  %v399 = vunpack.c.l.b16 %v64
  %v400 = vunpack.c.h.b16 %v64
  %v401 = vunpack.c.l.b16 %v65
  %v402 = vunpack.c.h.b16 %v65
  %v403 = vunpack.c.l.b16 %v66
  %v404 = vunpack.c.h.b16 %v66
  %v405 = vunpack.c.l.b16 %v67
  %v406 = vunpack.c.h.b16 %v67
  %v407 = vunpack.c.l.b16 %v68
  %v408 = vunpack.c.h.b16 %v68
  %v409 = vunpack.c.l.b16 %v69
  %v410 = vunpack.c.h.b16 %v69
  %v411 = vunpack.c.l.b16 %v70
  %v412 = vunpack.c.h.b16 %v70
  %v413 = vunpack.c.l.b16 %v71
  %v414 = vunpack.c.h.b16 %v71
  %v415 = vunpack.c.l.b16 %v72
  %v416 = vunpack.c.h.b16 %v72
  %v417 = vunpack.c.l.b16 %v73
  %v418 = vunpack.c.h.b16 %v73
  %v419 = vunpack.c.l.b16 %v74
  %v420 = vunpack.c.h.b16 %v74
  %v421 = vunpack.c.l.b16 %v75
  %v422 = vunpack.c.h.b16 %v75
  %v423 = vunpack.c.l.b16 %v76
  %v424 = vunpack.c.h.b16 %v76
  %v425 = vunpack.c.l.b16 %v77
  %v426 = vunpack.c.h.b16 %v77
  %v427 = vunpack.c.l.b16 %v78
  %v428 = vunpack.c.h.b16 %v78
  %v429 = vunpack.c.l.b16 %v79
  %v430 = vunpack.c.h.b16 %v79
  %v431 = vunpack.c.l.b16 %v80
  %v432 = vunpack.c.h.b16 %v80
  %v433 = vunpack.c.l.b16 %v81
  %v434 = vunpack.c.h.b16 %v81
  %v435 = vunpack.c.l.b16 %v82
  %v436 = vunpack.c.h.b16 %v82
  %v437 = vunpack.c.l.b16 %v83
  %v438 = vunpack.c.h.b16 %v83
  %v439 = vunpack.c.l.b16 %v84
  %v440 = vunpack.c.h.b16 %v84
  %v441 = vunpack.c.l.b16 %v85
  %v442 = vunpack.c.h.b16 %v85
  %v443 = vunpack.c.l.b16 %v86
  %v444 = vunpack.c.h.b16 %v86
  %v445 = vunpack.c.l.b16 %v87
  %v446 = vunpack.c.h.b16 %v87
  %v447 = vunpack.c.l.b16 %v88
  %v448 = vunpack.c.h.b16 %v88
  %v449 = vunpack.c.l.b16 %v89
  %v450 = vunpack.c.h.b16 %v89
  %v451 = vunpack.c.l.b16 %v90
  %v452 = vunpack.c.h.b16 %v90
  %v453 = vunpack.c.l.b16 %v91
  %v454 = vunpack.c.h.b16 %v91
  %v455 = vunpack.c.l.b16 %v92
  %v456 = vunpack.c.h.b16 %v92
  %v457 = vunpack.c.l.b16 %v93
  %v458 = vunpack.c.h.b16 %v93
  %v459 = vunpack.c.l.b16 %v94
  %v460 = vunpack.c.h.b16 %v94
  %v461 = vunpack.c.l.b16 %v95
  %v462 = vunpack.c.h.b16 %v95
  %v463 = vunpack.c.l.b16 %v96
  %v464 = vunpack.c.h.b16 %v96
  %v465 = vunpack.c.l.b16 %v97
  %v466 = vunpack.c.h.b16 %v97
  %v467 = vunpack.c.l.b16 %v98
  %v468 = vunpack.c.h.b16 %v98
  %v469 = vunpack.c.l.b16 %v99
  %v470 = vunpack.c.h.b16 %v99
  %v471 = vunpack.c.l.b16 %v100
  %v472 = vunpack.c.h.b16 %v100
  %v473 = vunpack.c.l.b16 %v101
  %v474 = vunpack.c.h.b16 %v101
  %v475 = vunpack.c.l.b16 %v102
  %v476 = vunpack.c.h.b16 %v102
  %v477 = vunpack.c.l.b16 %v103
  %v478 = vunpack.c.h.b16 %v103
  %v479 = vunpack.c.l.b16 %v104
  %v480 = vunpack.c.h.b16 %v104
  %v481 = vunpack.c.l.b16 %v105
  %v482 = vunpack.c.h.b16 %v105
  %v483 = vunpack.c.l.b16 %v106
  %v484 = vunpack.c.h.b16 %v106
  %v485 = vunpack.c.l.b16 %v107
  %v486 = vunpack.c.h.b16 %v107
  %v487 = vunpack.c.l.b16 %v108
  %v488 = vunpack.c.h.b16 %v108
  %v489 = vunpack.c.l.b16 %v109
  %v490 = vunpack.c.h.b16 %v109
  %v491 = vunpack.c.l.b16 %v110
  %v492 = vunpack.c.h.b16 %v110
  %v493 = vunpack.c.l.b16 %v111
  %v494 = vunpack.c.h.b16 %v111
  %v495 = vunpack.c.l.b16 %v112
  %v496 = vunpack.c.h.b16 %v112
  %v497 = vunpack.c.l.b16 %v113
  %v498 = vunpack.c.h.b16 %v113
  %v499 = vunpack.c.l.b16 %v114
  %v500 = vunpack.c.h.b16 %v114
  %v501 = vunpack.c.l.b16 %v115
  %v502 = vunpack.c.h.b16 %v115
  %v503 = vunpack.c.l.b16 %v116
  %v504 = vunpack.c.h.b16 %v116
  %v505 = vunpack.c.l.b16 %v117
  %v506 = vunpack.c.h.b16 %v117
  %v507 = vunpack.c.l.b16 %v118
  %v508 = vunpack.c.h.b16 %v118
  %v509 = vunpack.c.l.b16 %v119
  %v510 = vunpack.c.h.b16 %v119
  %v511 = vunpack.c.l.b16 %v120
  %v512 = vunpack.c.h.b16 %v120
  %v513 = vunpack.c.l.b16 %v121
  %v514 = vunpack.c.h.b16 %v121
  %v515 = vunpack.c.l.b16 %v122
  %v516 = vunpack.c.h.b16 %v122
  %v517 = vunpack.c.l.b16 %v123
  %v518 = vunpack.c.h.b16 %v123
  %v519 = vunpack.c.l.b16 %v124
  %v520 = vunpack.c.h.b16 %v124
  %v521 = vunpack.c.l.b16 %v125
  %v522 = vunpack.c.h.b16 %v125
  %v523 = vunpack.c.l.b16 %v126
  %v524 = vunpack.c.h.b16 %v126
  %v525 = vunpack.c.l.b16 %v127
  %v526 = vunpack.c.h.b16 %v127
  %v527 = vunpack.c.l.b16 %v128
  %v528 = vunpack.c.h.b16 %v128
  %v529 = vunpack.c.l.b16 %v129
  %v530 = vunpack.c.h.b16 %v129
  %v531 = vunpack.c.l.b16 %v130
  %v532 = vunpack.c.h.b16 %v130
  %v533 = vunpack.c.l.b16 %v131
  %v534 = vunpack.c.h.b16 %v131
  %v535 = vunpack.c.l.b16 %v132
  %v536 = vunpack.c.h.b16 %v132
  %v537 = vunpack.c.l.b16 %v133
  %v538 = vunpack.c.h.b16 %v133
  %v539 = vunpack.c.l.b16 %v134
  %v540 = vunpack.c.h.b16 %v134
  %v541 = vunpack.c.l.b16 %v135
  %v542 = vunpack.c.h.b16 %v135
  %v543 = vunpack.c.l.b16 %v136
  %v544 = vunpack.c.h.b16 %v136
  %v545 = vunpack.c.l.b16 %v137
  %v546 = vunpack.c.h.b16 %v137
  %v547 = vunpack.c.l.b16 %v138
  %v548 = vunpack.c.h.b16 %v138
  %v549 = vunpack.c.l.b16 %v139
  %v550 = vunpack.c.h.b16 %v139
  %v551 = vunpack.c.l.b16 %v140
  %v552 = vunpack.c.h.b16 %v140
  %v553 = vunpack.c.l.b16 %v141
  %v554 = vunpack.c.h.b16 %v141
  %v555 = vunpack.c.l.b16 %v142
  %v556 = vunpack.c.h.b16 %v142
  %v557 = vunpack.c.l.b16 %v143
  %v558 = vunpack.c.h.b16 %v143
  %v559 = vunpack.c.l.b16 %v144
  %v560 = vunpack.c.h.b16 %v144
  %v561 = vunpack.c.l.b16 %v145
  %v562 = vunpack.c.h.b16 %v145
  %v563 = vunpack.c.l.b16 %v146
  %v564 = vunpack.c.h.b16 %v146
  %v565 = vunpack.c.l.b16 %v147
  %v566 = vunpack.c.h.b16 %v147
  %v567 = vunpack.c.l.b16 %v148
  %v568 = vunpack.c.h.b16 %v148
  %v569 = vunpack.c.l.b16 %v149
  %v570 = vunpack.c.h.b16 %v149
  %v571 = vunpack.c.l.b16 %v150
  %v572 = vunpack.c.h.b16 %v150
  %v573 = vunpack.c.l.b16 %v151
  %v574 = vunpack.c.h.b16 %v151
  %v575 = vunpack.c.l.b16 %v152
  %v576 = vunpack.c.h.b16 %v152
  %v577 = vunpack.c.l.b16 %v153
  %v578 = vunpack.c.h.b16 %v153
  %v579 = vunpack.c.l.b16 %v154
  %v580 = vunpack.c.h.b16 %v154
  %v581 = vunpack.c.l.b16 %v155
  %v582 = vunpack.c.h.b16 %v155
  %v583 = vunpack.c.l.b16 %v156
  %v584 = vunpack.c.h.b16 %v156
  %v585 = vunpack.c.l.b16 %v157
  %v586 = vunpack.c.h.b16 %v157
  %v587 = vunpack.c.l.b16 %v158
  %v588 = vunpack.c.h.b16 %v158
  %v589 = vunpack.c.l.b16 %v159
  %v590 = vunpack.c.h.b16 %v159
  %v591 = vpack.c.b16 %v397, %v395
  %v592 = vpack.c.b16 %v398, %v396
  %v593 = vpack.c.b16 %v401, %v399
  %v594 = vpack.c.b16 %v402, %v400
  %v595 = vpack.c.b16 %v405, %v403
  %v596 = vpack.c.b16 %v406, %v404
  %v597 = vpack.c.b16 %v409, %v407
  %v598 = vpack.c.b16 %v410, %v408
  %v599 = vpack.c.b16 %v413, %v411
  %v600 = vpack.c.b16 %v414, %v412
  %v601 = vpack.c.b16 %v417, %v415
  %v602 = vpack.c.b16 %v418, %v416
  %v603 = vpack.c.b16 %v421, %v419
  %v604 = vpack.c.b16 %v422, %v420
  %v605 = vpack.c.b16 %v425, %v423
  %v606 = vpack.c.b16 %v426, %v424
  %v607 = vpack.c.b16 %v429, %v427
  %v608 = vpack.c.b16 %v430, %v428
  %v609 = vpack.c.b16 %v433, %v431
  %v610 = vpack.c.b16 %v434, %v432
  %v611 = vpack.c.b16 %v437, %v435
  %v612 = vpack.c.b16 %v438, %v436
  %v613 = vpack.c.b16 %v441, %v439
  %v614 = vpack.c.b16 %v442, %v440
  %v615 = vpack.c.b16 %v445, %v443
  %v616 = vpack.c.b16 %v446, %v444
  %v617 = vpack.c.b16 %v449, %v447
  %v618 = vpack.c.b16 %v450, %v448
  %v619 = vpack.c.b16 %v453, %v451
  %v620 = vpack.c.b16 %v454, %v452
  %v621 = vpack.c.b16 %v457, %v455
  %v622 = vpack.c.b16 %v458, %v456
  %v623 = vpack.c.b16 %v461, %v459
  %v624 = vpack.c.b16 %v462, %v460
  %v625 = vpack.c.b16 %v465, %v463
  %v626 = vpack.c.b16 %v466, %v464
  %v627 = vpack.c.b16 %v469, %v467
  %v628 = vpack.c.b16 %v470, %v468
  %v629 = vpack.c.b16 %v473, %v471
  %v630 = vpack.c.b16 %v474, %v472
  %v631 = vpack.c.b16 %v477, %v475
  %v632 = vpack.c.b16 %v478, %v476
  %v633 = vpack.c.b16 %v481, %v479
  %v634 = vpack.c.b16 %v482, %v480
  %v635 = vpack.c.b16 %v485, %v483
  %v636 = vpack.c.b16 %v486, %v484
  %v637 = vpack.c.b16 %v489, %v487
  %v638 = vpack.c.b16 %v490, %v488
  %v639 = vpack.c.b16 %v493, %v491
  %v640 = vpack.c.b16 %v494, %v492
  %v641 = vpack.c.b16 %v497, %v495
  %v642 = vpack.c.b16 %v498, %v496
  %v643 = vpack.c.b16 %v501, %v499
  %v644 = vpack.c.b16 %v502, %v500
  %v645 = vpack.c.b16 %v505, %v503
  %v646 = vpack.c.b16 %v506, %v504
  %v647 = vpack.c.b16 %v509, %v507
  %v648 = vpack.c.b16 %v510, %v508
  %v649 = vpack.c.b16 %v513, %v511
  %v650 = vpack.c.b16 %v514, %v512
  %v651 = vpack.c.b16 %v517, %v515
  %v652 = vpack.c.b16 %v518, %v516
  %v653 = vpack.c.b16 %v521, %v519
  %v654 = vpack.c.b16 %v522, %v520
  %v655 = vpack.c.b16 %v525, %v523
  %v656 = vpack.c.b16 %v526, %v524
  %v657 = vpack.c.b16 %v529, %v527
  %v658 = vpack.c.b16 %v530, %v528
  %v659 = vpack.c.b16 %v533, %v531
  %v660 = vpack.c.b16 %v534, %v532
  %v661 = vpack.c.b16 %v537, %v535
  %v662 = vpack.c.b16 %v538, %v536
  %v663 = vpack.c.b16 %v541, %v539
  %v664 = vpack.c.b16 %v542, %v540
  %v665 = vpack.c.b16 %v545, %v543
  %v666 = vpack.c.b16 %v546, %v544
  %v667 = vpack.c.b16 %v549, %v547
  %v668 = vpack.c.b16 %v550, %v548
  %v669 = vpack.c.b16 %v553, %v551
  %v670 = vpack.c.b16 %v554, %v552
  %v671 = vpack.c.b16 %v557, %v555
  %v672 = vpack.c.b16 %v558, %v556
  %v673 = vpack.c.b16 %v561, %v559
  %v674 = vpack.c.b16 %v562, %v560
  %v675 = vpack.c.b16 %v565, %v563
  %v676 = vpack.c.b16 %v566, %v564
  %v677 = vpack.c.b16 %v569, %v567
  %v678 = vpack.c.b16 %v570, %v568
  %v679 = vpack.c.b16 %v573, %v571
  %v680 = vpack.c.b16 %v574, %v572
  %v681 = vpack.c.b16 %v577, %v575
  %v682 = vpack.c.b16 %v578, %v576
  %v683 = vpack.c.b16 %v581, %v579
  %v684 = vpack.c.b16 %v582, %v580
  %v685 = vpack.c.b16 %v585, %v583
  %v686 = vpack.c.b16 %v586, %v584
  %v687 = vpack.c.b16 %v589, %v587
  %v688 = vpack.c.b16 %v590, %v588
  %vm787 = vcmask 130048
  %v789 = vsel %vm787, %v60, 0
  %791 = vmatprep.subr.bf16.mxu0 %v592
  %792 = vmatpush1.bf16.msra.mxu0 %v591
  %793 = vmatprep.subr.bf16.mxu0 %v594
  %794 = vmatpush1.bf16.msra.mxu0 %v593
  %795 = vmatprep.subr.bf16.mxu0 %v596
  %796 = vmatpush1.bf16.msra.mxu0 %v595
  %797 = vmatprep.subr.bf16.mxu0 %v598
  %798 = vmatpush1.bf16.msra.mxu0 %v597
  %799 = vmatprep.subr.bf16.mxu0 %v600
  %800 = vmatpush1.bf16.msra.mxu0 %v599
  %801 = vmatprep.subr.bf16.mxu0 %v602
  %802 = vmatpush1.bf16.msra.mxu0 %v601
  %803 = vmatprep.subr.bf16.mxu0 %v604
  %804 = vmatpush1.bf16.msra.mxu0 %v603
  %805 = vmatprep.subr.bf16.mxu0 %v606
  %806 = vmatpush1.bf16.msra.mxu0 %v605
  %807 = vmatprep.subr.bf16.mxu0 %v608
  %808 = vmatpush1.bf16.msra.mxu0 %v607
  %809 = vmatprep.subr.bf16.mxu0 %v610
  %810 = vmatpush1.bf16.msra.mxu0 %v609
  %811 = vmatprep.subr.bf16.mxu0 %v612
  %812 = vmatpush1.bf16.msra.mxu0 %v611
  %813 = vmatprep.subr.bf16.mxu0 %v614
  %814 = vmatpush1.bf16.msra.mxu0 %v613
  %815 = vmatprep.subr.bf16.mxu0 %v616
  %816 = vmatpush1.bf16.msra.mxu0 %v615
  %817 = vmatprep.subr.bf16.mxu0 %v618
  %818 = vmatpush1.bf16.msra.mxu0 %v617
  %819 = vmatprep.subr.bf16.mxu0 %v620
  %820 = vmatpush1.bf16.msra.mxu0 %v619
  %821 = vmatprep.subr.bf16.mxu0 %v622
  %822 = vmatpush1.bf16.msra.mxu0 %v621
  %823 = vmatprep.mubr.bf16.mxu0 %v55
  %824 = vmatmul.mubr.bf16.gmra.mrb[0].mxu0 %v54
  %v825 = vpop.f32.mrb[0].mxu0
  %v826 = vadd.f32 %v291, %v825
  %v827 = vpop.f32.mrb[0].mxu0
  %v828 = vadd.f32 %v293, %v827
  %v829 = vpop.f32.mrb[0].mxu0
  %v830 = vpop.f32.mrb[0].mxu0
  %831 = vdwg.mxu0
  %832 = vmatprep.subr.bf16.mxu0 %v624
  %833 = vmatpush1.bf16.msra.mxu0 %v623
  %834 = vmatprep.subr.bf16.mxu0 %v626
  %835 = vmatpush1.bf16.msra.mxu0 %v625
  %836 = vmatprep.subr.bf16.mxu0 %v628
  %837 = vmatpush1.bf16.msra.mxu0 %v627
  %838 = vmatprep.subr.bf16.mxu0 %v630
  %839 = vmatpush1.bf16.msra.mxu0 %v629
  %840 = vmatprep.subr.bf16.mxu0 %v632
  %841 = vmatpush1.bf16.msra.mxu0 %v631
  %842 = vmatprep.subr.bf16.mxu0 %v634
  %843 = vmatpush1.bf16.msra.mxu0 %v633
  %844 = vmatprep.subr.bf16.mxu0 %v636
  %845 = vmatpush1.bf16.msra.mxu0 %v635
  %846 = vmatprep.subr.bf16.mxu0 %v638
  %847 = vmatpush1.bf16.msra.mxu0 %v637
  %848 = vmatprep.subr.bf16.mxu0 %v640
  %849 = vmatpush1.bf16.msra.mxu0 %v639
  %850 = vmatprep.subr.bf16.mxu0 %v642
  %851 = vmatpush1.bf16.msra.mxu0 %v641
  %852 = vmatprep.subr.bf16.mxu0 %v644
  %853 = vmatpush1.bf16.msra.mxu0 %v643
  %854 = vmatprep.subr.bf16.mxu0 %v646
  %855 = vmatpush1.bf16.msra.mxu0 %v645
  %856 = vmatprep.subr.bf16.mxu0 %v648
  %857 = vmatpush1.bf16.msra.mxu0 %v647
  %858 = vmatprep.subr.bf16.mxu0 %v650
  %859 = vmatpush1.bf16.msra.mxu0 %v649
  %860 = vmatprep.subr.bf16.mxu0 %v652
  %861 = vmatpush1.bf16.msra.mxu0 %v651
  %862 = vmatprep.subr.bf16.mxu0 %v654
  %863 = vmatpush1.bf16.msra.mxu0 %v653
  %864 = vmatprep.mubr.bf16.mxu0 %v57
  %865 = vmatmul.mubr.bf16.gmra.mrb[0].mxu0 %v56
  %v866 = vpop.f32.mrb[0].mxu0
  %v867 = vadd.f32 %v826, %v866
  %v868 = vpop.f32.mrb[0].mxu0
  %v869 = vadd.f32 %v828, %v868
  %v870 = vpop.f32.mrb[0].mxu0
  %v871 = vpop.f32.mrb[0].mxu0
  %872 = vdwg.mxu0
  %873 = vmatprep.subr.bf16.mxu0 %v656
  %874 = vmatpush1.bf16.msra.mxu0 %v655
  %875 = vmatprep.subr.bf16.mxu0 %v658
  %876 = vmatpush1.bf16.msra.mxu0 %v657
  %877 = vmatprep.subr.bf16.mxu0 %v660
  %878 = vmatpush1.bf16.msra.mxu0 %v659
  %879 = vmatprep.subr.bf16.mxu0 %v662
  %880 = vmatpush1.bf16.msra.mxu0 %v661
  %881 = vmatprep.subr.bf16.mxu0 %v664
  %882 = vmatpush1.bf16.msra.mxu0 %v663
  %883 = vmatprep.subr.bf16.mxu0 %v666
  %884 = vmatpush1.bf16.msra.mxu0 %v665
  %885 = vmatprep.subr.bf16.mxu0 %v668
  %886 = vmatpush1.bf16.msra.mxu0 %v667
  %887 = vmatprep.subr.bf16.mxu0 %v670
  %888 = vmatpush1.bf16.msra.mxu0 %v669
  %889 = vmatprep.subr.bf16.mxu0 %v672
  %890 = vmatpush1.bf16.msra.mxu0 %v671
  %891 = vmatprep.subr.bf16.mxu0 %v674
  %892 = vmatpush1.bf16.msra.mxu0 %v673
  %893 = vmatprep.subr.bf16.mxu0 %v676
  %894 = vmatpush1.bf16.msra.mxu0 %v675
  %895 = vmatprep.subr.bf16.mxu0 %v678
  %896 = vmatpush1.bf16.msra.mxu0 %v677
  %897 = vmatprep.subr.bf16.mxu0 %v680
  %898 = vmatpush1.bf16.msra.mxu0 %v679
  %899 = vmatprep.subr.bf16.mxu0 %v682
  %900 = vmatpush1.bf16.msra.mxu0 %v681
  %901 = vmatprep.subr.bf16.mxu0 %v684
  %902 = vmatpush1.bf16.msra.mxu0 %v683
  %903 = vmatprep.subr.bf16.mxu0 %v686
  %904 = vmatpush1.bf16.msra.mxu0 %v685
  %905 = vmatprep.mubr.bf16.mxu0 %v59
  %906 = vmatmul.mubr.bf16.gmra.mrb[0].mxu0 %v58
  %v907 = vpop.f32.mrb[0].mxu0
  %v908 = vadd.f32 %v867, %v907
  %v909 = vpop.f32.mrb[0].mxu0
  %v910 = vadd.f32 %v869, %v909
  %v911 = vpop.f32.mrb[0].mxu0
  %v912 = vpop.f32.mrb[0].mxu0
  %913 = vdwg.mxu0
  %914 = vmatprep.subr.bf16.mxu0 %v688
  %915 = vmatpush1.bf16.msra.mxu0 %v687
  %916 = vmatprep.subr.bf16.mxu0 0
  %917 = vmatpush1.bf16.msra.mxu0 0
  %918 = vmatprep.subr.bf16.mxu0 0
  %919 = vmatpush1.bf16.msra.mxu0 0
  %920 = vmatprep.subr.bf16.mxu0 0
  %921 = vmatpush1.bf16.msra.mxu0 0
  %922 = vmatprep.subr.bf16.mxu0 0
  %923 = vmatpush1.bf16.msra.mxu0 0
  %924 = vmatprep.subr.bf16.mxu0 0
  %925 = vmatpush1.bf16.msra.mxu0 0
  %926 = vmatprep.subr.bf16.mxu0 0
  %927 = vmatpush1.bf16.msra.mxu0 0
  %928 = vmatprep.subr.bf16.mxu0 0
  %929 = vmatpush1.bf16.msra.mxu0 0
  %930 = vmatprep.subr.bf16.mxu0 0
  %931 = vmatpush1.bf16.msra.mxu0 0
  %932 = vmatprep.subr.bf16.mxu0 0
  %933 = vmatpush1.bf16.msra.mxu0 0
  %934 = vmatprep.subr.bf16.mxu0 0
  %935 = vmatpush1.bf16.msra.mxu0 0
  %936 = vmatprep.subr.bf16.mxu0 0
  %937 = vmatpush1.bf16.msra.mxu0 0
  %938 = vmatprep.subr.bf16.mxu0 0
  %939 = vmatpush1.bf16.msra.mxu0 0
  %940 = vmatprep.subr.bf16.mxu0 0
  %941 = vmatpush1.bf16.msra.mxu0 0
  %942 = vmatprep.subr.bf16.mxu0 0
  %943 = vmatpush1.bf16.msra.mxu0 0
  %944 = vmatprep.subr.bf16.mxu0 0
  %945 = vmatpush1.bf16.msra.mxu0 0
  %946 = vmatprep.mubr.bf16.mxu0 0
  %947 = vmatmul.mubr.bf16.gmra.mrb[0].mxu0 %v789
  %v948 = vpop.f32.mrb[0].mxu0
  %v949 = vadd.f32 %v908, %v948
  %v950 = vpop.f32.mrb[0].mxu0
  %v951 = vadd.f32 %v910, %v950
  %v952 = vpop.f32.mrb[0].mxu0
  %v953 = vpop.f32.mrb[0].mxu0
  %954 = vdwg.mxu0
  %v955 = vld [vmem:[%s5] sm:$0x3]
  %v957 = vlaneseq
  %v958 = vshrl.u32 %v957, 7
  %v959 = vsub.s32 0, %v958
  %v960 = vrot.slane %v955, %v959
  %v961 = vlaneseq
  %v962 = vshrl.u32 %v961, 7
  %v963 = vsub.s32 1, %v962
  %v964 = vrot.slane %v955, %v963
  %v967 = vadd.f32 %v949, %v960
  %v968 = vadd.f32 %v951, %v964
  %v969 = vmax.f32 %v967, 0.0
  %v970 = vmax.f32 %v968, 0.0
  %v971 = vpack.c.bf16 %v969, %v969
  %v972 = vpack.c.bf16 %v970, %v970
  %v973 = vld [vmem:[%s6] sm:$0xff]
  %v974 = vld [vmem:[%s6 + $0x8] sm:$0xff]
  %v975 = vld [vmem:[%s6 + $0x10] sm:$0xff]
  %v976 = vld [vmem:[%s6 + $0x18] sm:$0xff]
  %v977 = vld [vmem:[%s6 + $0x20] sm:$0xff]
  %v978 = vld [vmem:[%s6 + $0x28] sm:$0xff]
  %v979 = vld [vmem:[%s6 + $0x30] sm:$0xff]
  %v980 = vld [vmem:[%s6 + $0x38] sm:$0xff]
  %v981 = vld [vmem:[%s6 + $0x40] sm:$0xff]
  %v982 = vld [vmem:[%s6 + $0x48] sm:$0xff]
  %v983 = vld [vmem:[%s6 + $0x50] sm:$0xff]
  %v984 = vld [vmem:[%s6 + $0x58] sm:$0xff]
  %v985 = vld [vmem:[%s6 + $0x60] sm:$0xff]
  %v986 = vld [vmem:[%s6 + $0x68] sm:$0xff]
  %v987 = vld [vmem:[%s6 + $0x70] sm:$0xff]
  %v988 = vld [vmem:[%s6 + $0x78] sm:$0xff]
  %v989 = vld [vmem:[%s6 + $0x80] sm:$0xff]
  %v990 = vld [vmem:[%s6 + $0x88] sm:$0xff]
  %v991 = vld [vmem:[%s6 + $0x90] sm:$0xff]
  %v992 = vld [vmem:[%s6 + $0x98] sm:$0xff]
  %v993 = vld [vmem:[%s6 + $0xa0] sm:$0xff]
  %v994 = vld [vmem:[%s6 + $0xa8] sm:$0xff]
  %v995 = vld [vmem:[%s6 + $0xb0] sm:$0xff]
  %v996 = vld [vmem:[%s6 + $0xb8] sm:$0xff]
  %v997 = vld [vmem:[%s6 + $0xc0] sm:$0xff]
  %v998 = vld [vmem:[%s6 + $0xc8] sm:$0xff]
  %v999 = vld [vmem:[%s6 + $0xd0] sm:$0xff]
  %v1000 = vld [vmem:[%s6 + $0xd8] sm:$0xff]
  %v1001 = vld [vmem:[%s6 + $0xe0] sm:$0xff]
  %v1002 = vld [vmem:[%s6 + $0xe8] sm:$0xff]
  %v1003 = vld [vmem:[%s6 + $0xf0] sm:$0xff]
  %v1004 = vld [vmem:[%s6 + $0xf8] sm:$0xff]
  %v1005 = vld [vmem:[%s7] sm:$0x3]
  %v1007 = vlaneseq
  %v1008 = vshrl.u32 %v1007, 7
  %v1009 = vsub.s32 0, %v1008
  %v1010 = vrot.slane %v1005, %v1009
  %v1011 = vlaneseq
  %v1012 = vshrl.u32 %v1011, 7
  %v1013 = vsub.s32 1, %v1012
  %v1014 = vrot.slane %v1005, %v1013
  %v1049 = vunpack.c.l.b16 %v973
  %v1050 = vunpack.c.h.b16 %v973
  %v1051 = vunpack.c.l.b16 %v974
  %v1052 = vunpack.c.h.b16 %v974
  %v1053 = vunpack.c.l.b16 %v975
  %v1054 = vunpack.c.h.b16 %v975
  %v1055 = vunpack.c.l.b16 %v976
  %v1056 = vunpack.c.h.b16 %v976
  %v1057 = vunpack.c.l.b16 %v977
  %v1058 = vunpack.c.h.b16 %v977
  %v1059 = vunpack.c.l.b16 %v978
  %v1060 = vunpack.c.h.b16 %v978
  %v1061 = vunpack.c.l.b16 %v979
  %v1062 = vunpack.c.h.b16 %v979
  %v1063 = vunpack.c.l.b16 %v980
  %v1064 = vunpack.c.h.b16 %v980
  %v1065 = vunpack.c.l.b16 %v981
  %v1066 = vunpack.c.h.b16 %v981
  %v1067 = vunpack.c.l.b16 %v982
  %v1068 = vunpack.c.h.b16 %v982
  %v1069 = vunpack.c.l.b16 %v983
  %v1070 = vunpack.c.h.b16 %v983
  %v1071 = vunpack.c.l.b16 %v984
  %v1072 = vunpack.c.h.b16 %v984
  %v1073 = vunpack.c.l.b16 %v985
  %v1074 = vunpack.c.h.b16 %v985
  %v1075 = vunpack.c.l.b16 %v986
  %v1076 = vunpack.c.h.b16 %v986
  %v1077 = vunpack.c.l.b16 %v987
  %v1078 = vunpack.c.h.b16 %v987
  %v1079 = vunpack.c.l.b16 %v988
  %v1080 = vunpack.c.h.b16 %v988
  %v1081 = vunpack.c.l.b16 %v989
  %v1082 = vunpack.c.h.b16 %v989
  %v1083 = vunpack.c.l.b16 %v990
  %v1084 = vunpack.c.h.b16 %v990
  %v1085 = vunpack.c.l.b16 %v991
  %v1086 = vunpack.c.h.b16 %v991
  %v1087 = vunpack.c.l.b16 %v992
  %v1088 = vunpack.c.h.b16 %v992
  %v1089 = vunpack.c.l.b16 %v993
  %v1090 = vunpack.c.h.b16 %v993
  %v1091 = vunpack.c.l.b16 %v994
  %v1092 = vunpack.c.h.b16 %v994
  %v1093 = vunpack.c.l.b16 %v995
  %v1094 = vunpack.c.h.b16 %v995
  %v1095 = vunpack.c.l.b16 %v996
  %v1096 = vunpack.c.h.b16 %v996
  %v1097 = vunpack.c.l.b16 %v997
  %v1098 = vunpack.c.h.b16 %v997
  %v1099 = vunpack.c.l.b16 %v998
  %v1100 = vunpack.c.h.b16 %v998
  %v1101 = vunpack.c.l.b16 %v999
  %v1102 = vunpack.c.h.b16 %v999
  %v1103 = vunpack.c.l.b16 %v1000
  %v1104 = vunpack.c.h.b16 %v1000
  %v1105 = vunpack.c.l.b16 %v1001
  %v1106 = vunpack.c.h.b16 %v1001
  %v1107 = vunpack.c.l.b16 %v1002
  %v1108 = vunpack.c.h.b16 %v1002
  %v1109 = vunpack.c.l.b16 %v1003
  %v1110 = vunpack.c.h.b16 %v1003
  %v1111 = vunpack.c.l.b16 %v1004
  %v1112 = vunpack.c.h.b16 %v1004
  %v1113 = vpack.c.b16 %v1051, %v1049
  %v1114 = vpack.c.b16 %v1052, %v1050
  %v1115 = vpack.c.b16 %v1055, %v1053
  %v1116 = vpack.c.b16 %v1056, %v1054
  %v1117 = vpack.c.b16 %v1059, %v1057
  %v1118 = vpack.c.b16 %v1060, %v1058
  %v1119 = vpack.c.b16 %v1063, %v1061
  %v1120 = vpack.c.b16 %v1064, %v1062
  %v1121 = vpack.c.b16 %v1067, %v1065
  %v1122 = vpack.c.b16 %v1068, %v1066
  %v1123 = vpack.c.b16 %v1071, %v1069
  %v1124 = vpack.c.b16 %v1072, %v1070
  %v1125 = vpack.c.b16 %v1075, %v1073
  %v1126 = vpack.c.b16 %v1076, %v1074
  %v1127 = vpack.c.b16 %v1079, %v1077
  %v1128 = vpack.c.b16 %v1080, %v1078
  %v1129 = vpack.c.b16 %v1083, %v1081
  %v1130 = vpack.c.b16 %v1084, %v1082
  %v1131 = vpack.c.b16 %v1087, %v1085
  %v1132 = vpack.c.b16 %v1088, %v1086
  %v1133 = vpack.c.b16 %v1091, %v1089
  %v1134 = vpack.c.b16 %v1092, %v1090
  %v1135 = vpack.c.b16 %v1095, %v1093
  %v1136 = vpack.c.b16 %v1096, %v1094
  %v1137 = vpack.c.b16 %v1099, %v1097
  %v1138 = vpack.c.b16 %v1100, %v1098
  %v1139 = vpack.c.b16 %v1103, %v1101
  %v1140 = vpack.c.b16 %v1104, %v1102
  %v1141 = vpack.c.b16 %v1107, %v1105
  %v1142 = vpack.c.b16 %v1108, %v1106
  %v1143 = vpack.c.b16 %v1111, %v1109
  %v1144 = vpack.c.b16 %v1112, %v1110
  %1177 = vmatprep.subr.bf16.mxu0 %v1114
  %1178 = vmatpush1.bf16.msra.mxu0 %v1113
  %1179 = vmatprep.subr.bf16.mxu0 %v1116
  %1180 = vmatpush1.bf16.msra.mxu0 %v1115
  %1181 = vmatprep.subr.bf16.mxu0 %v1118
  %1182 = vmatpush1.bf16.msra.mxu0 %v1117
  %1183 = vmatprep.subr.bf16.mxu0 %v1120
  %1184 = vmatpush1.bf16.msra.mxu0 %v1119
  %1185 = vmatprep.subr.bf16.mxu0 %v1122
  %1186 = vmatpush1.bf16.msra.mxu0 %v1121
  %1187 = vmatprep.subr.bf16.mxu0 %v1124
  %1188 = vmatpush1.bf16.msra.mxu0 %v1123
  %1189 = vmatprep.subr.bf16.mxu0 %v1126
  %1190 = vmatpush1.bf16.msra.mxu0 %v1125
  %1191 = vmatprep.subr.bf16.mxu0 %v1128
  %1192 = vmatpush1.bf16.msra.mxu0 %v1127
  %1193 = vmatprep.subr.bf16.mxu0 %v1130
  %1194 = vmatpush1.bf16.msra.mxu0 %v1129
  %1195 = vmatprep.subr.bf16.mxu0 %v1132
  %1196 = vmatpush1.bf16.msra.mxu0 %v1131
  %1197 = vmatprep.subr.bf16.mxu0 %v1134
  %1198 = vmatpush1.bf16.msra.mxu0 %v1133
  %1199 = vmatprep.subr.bf16.mxu0 %v1136
  %1200 = vmatpush1.bf16.msra.mxu0 %v1135
  %1201 = vmatprep.subr.bf16.mxu0 %v1138
  %1202 = vmatpush1.bf16.msra.mxu0 %v1137
  %1203 = vmatprep.subr.bf16.mxu0 %v1140
  %1204 = vmatpush1.bf16.msra.mxu0 %v1139
  %1205 = vmatprep.subr.bf16.mxu0 %v1142
  %1206 = vmatpush1.bf16.msra.mxu0 %v1141
  %1207 = vmatprep.subr.bf16.mxu0 %v1144
  %1208 = vmatpush1.bf16.msra.mxu0 %v1143
  %1209 = vmatprep.mubr.bf16.mxu0 %v972
  %1210 = vmatmul.mubr.bf16.gmra.mrb[0].mxu0 %v971
  %v1211 = vpop.f32.mrb[0].mxu0
  %v1212 = vadd.f32 %v1010, %v1211
  %v1213 = vpop.f32.mrb[0].mxu0
  %v1214 = vadd.f32 %v1014, %v1213
  %v1215 = vpop.f32.mrb[0].mxu0
  %v1216 = vpop.f32.mrb[0].mxu0
  %1217 = vdwg.mxu0
  %v1218 = vld [vmem:[%s2] sm:$0xf]
  %v1219 = vunpack.c.l.bf16 %v1218
  %v1220 = vmul.f32 %v1214, 0.5
  %v1221 = vmul.f32 %v1220, 1.442695
  %v1222 = vpow.pop %v1221
  %v1223 = vmul.f32 %v1219, %v1222
  %v1224 = vadd.f32 %v1223, %v1212
  %v1225 = vpack.c.bf16 %v1224, %v1224
  %v1226 = vld [vmem:[%s8] sm:$0xff]
  %v1227 = vld [vmem:[%s8 + $0x8] sm:$0xff]
  %v1228 = vld [vmem:[%s8 + $0x10] sm:$0xff]
  %v1229 = vld [vmem:[%s8 + $0x18] sm:$0xff]
  %v1230 = vld [vmem:[%s8 + $0x20] sm:$0xff]
  %v1231 = vld [vmem:[%s8 + $0x28] sm:$0xff]
  %v1232 = vld [vmem:[%s8 + $0x30] sm:$0xff]
  %v1233 = vld [vmem:[%s8 + $0x38] sm:$0xff]
  %v1234 = vld [vmem:[%s8 + $0x40] sm:$0xff]
  %v1235 = vld [vmem:[%s8 + $0x48] sm:$0xff]
  %v1236 = vld [vmem:[%s8 + $0x50] sm:$0xff]
  %v1237 = vld [vmem:[%s8 + $0x58] sm:$0xff]
  %v1238 = vld [vmem:[%s8 + $0x60] sm:$0xff]
  %v1239 = vld [vmem:[%s8 + $0x68] sm:$0xff]
  %v1240 = vld [vmem:[%s8 + $0x70] sm:$0xff]
  %v1241 = vld [vmem:[%s8 + $0x78] sm:$0xff]
  %v1242 = vld [vmem:[%s9] sm:$0xff]
  %v1243 = vld [vmem:[%s9 + $0x8] sm:$0xff]
  %v1244 = vld [vmem:[%s9 + $0x10] sm:$0xff]
  %v1245 = vld [vmem:[%s9 + $0x18] sm:$0xff]
  %v1246 = vld [vmem:[%s9 + $0x20] sm:$0xff]
  %v1247 = vld [vmem:[%s9 + $0x28] sm:$0xff]
  %v1248 = vld [vmem:[%s9 + $0x30] sm:$0xff]
  %v1249 = vld [vmem:[%s9 + $0x38] sm:$0xff]
  %v1250 = vld [vmem:[%s9 + $0x40] sm:$0xff]
  %v1251 = vld [vmem:[%s9 + $0x48] sm:$0xff]
  %v1252 = vld [vmem:[%s9 + $0x50] sm:$0xff]
  %v1253 = vld [vmem:[%s9 + $0x58] sm:$0xff]
  %v1254 = vld [vmem:[%s9 + $0x60] sm:$0xff]
  %v1255 = vld [vmem:[%s9 + $0x68] sm:$0xff]
  %v1256 = vld [vmem:[%s9 + $0x70] sm:$0xff]
  %v1257 = vld [vmem:[%s9 + $0x78] sm:$0xff]
  %v1274 = vunpack.c.l.b16 %v1242
  %v1275 = vunpack.c.h.b16 %v1242
  %v1276 = vunpack.c.l.b16 %v1243
  %v1277 = vunpack.c.h.b16 %v1243
  %v1278 = vunpack.c.l.b16 %v1244
  %v1279 = vunpack.c.h.b16 %v1244
  %v1280 = vunpack.c.l.b16 %v1245
  %v1281 = vunpack.c.h.b16 %v1245
  %v1282 = vunpack.c.l.b16 %v1246
  %v1283 = vunpack.c.h.b16 %v1246
  %v1284 = vunpack.c.l.b16 %v1247
  %v1285 = vunpack.c.h.b16 %v1247
  %v1286 = vunpack.c.l.b16 %v1248
  %v1287 = vunpack.c.h.b16 %v1248
  %v1288 = vunpack.c.l.b16 %v1249
  %v1289 = vunpack.c.h.b16 %v1249
  %v1290 = vunpack.c.l.b16 %v1250
  %v1291 = vunpack.c.h.b16 %v1250
  %v1292 = vunpack.c.l.b16 %v1251
  %v1293 = vunpack.c.h.b16 %v1251
  %v1294 = vunpack.c.l.b16 %v1252
  %v1295 = vunpack.c.h.b16 %v1252
  %v1296 = vunpack.c.l.b16 %v1253
  %v1297 = vunpack.c.h.b16 %v1253
  %v1298 = vunpack.c.l.b16 %v1254
  %v1299 = vunpack.c.h.b16 %v1254
  %v1300 = vunpack.c.l.b16 %v1255
  %v1301 = vunpack.c.h.b16 %v1255
  %v1302 = vunpack.c.l.b16 %v1256
  %v1303 = vunpack.c.h.b16 %v1256
  %v1304 = vunpack.c.l.b16 %v1257
  %v1305 = vunpack.c.h.b16 %v1257
  %v1306 = vpack.c.b16 %v1276, %v1274
  %v1307 = vpack.c.b16 %v1277, %v1275
  %v1308 = vpack.c.b16 %v1280, %v1278
  %v1309 = vpack.c.b16 %v1281, %v1279
  %v1310 = vpack.c.b16 %v1284, %v1282
  %v1311 = vpack.c.b16 %v1285, %v1283
  %v1312 = vpack.c.b16 %v1288, %v1286
  %v1313 = vpack.c.b16 %v1289, %v1287
  %v1314 = vpack.c.b16 %v1292, %v1290
  %v1315 = vpack.c.b16 %v1293, %v1291
  %v1316 = vpack.c.b16 %v1296, %v1294
  %v1317 = vpack.c.b16 %v1297, %v1295
  %v1318 = vpack.c.b16 %v1300, %v1298
  %v1319 = vpack.c.b16 %v1301, %v1299
  %v1320 = vpack.c.b16 %v1304, %v1302
  %v1321 = vpack.c.b16 %v1305, %v1303
  %1338 = vmatprep.subr.bf16.mxu0 %v1307
  %1339 = vmatpush1.bf16.msra.mxu0 %v1306
  %1340 = vmatprep.subr.bf16.mxu0 %v1309
  %1341 = vmatpush1.bf16.msra.mxu0 %v1308
  %1342 = vmatprep.subr.bf16.mxu0 %v1311
  %1343 = vmatpush1.bf16.msra.mxu0 %v1310
  %1344 = vmatprep.subr.bf16.mxu0 %v1313
  %1345 = vmatpush1.bf16.msra.mxu0 %v1312
  %1346 = vmatprep.subr.bf16.mxu0 %v1315
  %1347 = vmatpush1.bf16.msra.mxu0 %v1314
  %1348 = vmatprep.subr.bf16.mxu0 %v1317
  %1349 = vmatpush1.bf16.msra.mxu0 %v1316
  %1350 = vmatprep.subr.bf16.mxu0 %v1319
  %1351 = vmatpush1.bf16.msra.mxu0 %v1318
  %1352 = vmatprep.subr.bf16.mxu0 %v1321
  %1353 = vmatpush1.bf16.msra.mxu0 %v1320
  %1354 = vmatprep.subr.bf16.mxu0 0
  %1355 = vmatpush1.bf16.msra.mxu0 0
  %1356 = vmatprep.subr.bf16.mxu0 0
  %1357 = vmatpush1.bf16.msra.mxu0 0
  %1358 = vmatprep.subr.bf16.mxu0 0
  %1359 = vmatpush1.bf16.msra.mxu0 0
  %1360 = vmatprep.subr.bf16.mxu0 0
  %1361 = vmatpush1.bf16.msra.mxu0 0
  %1362 = vmatprep.subr.bf16.mxu0 0
  %1363 = vmatpush1.bf16.msra.mxu0 0
  %1364 = vmatprep.subr.bf16.mxu0 0
  %1365 = vmatpush1.bf16.msra.mxu0 0
  %1366 = vmatprep.subr.bf16.mxu0 0
  %1367 = vmatpush1.bf16.msra.mxu0 0
  %1368 = vmatprep.subr.bf16.mxu0 0
  %1369 = vmatpush1.bf16.msra.mxu0 0
  %1370 = vmatprep.mubr.bf16.mxu0 0
  %1371 = vmatmul.mubr.bf16.gmra.mrb[0].mxu0 %v61
  %v1372 = vpop.f32.mrb[0].mxu0
  %v1373 = vadd.f32 0.0, %v1372
  %v1374 = vpop.f32.mrb[0].mxu0
  %v1375 = vadd.f32 0.0, %v1374
  %v1376 = vpop.f32.mrb[0].mxu0
  %v1377 = vpop.f32.mrb[0].mxu0
  %1378 = vdwg.mxu0
  %v1395 = vunpack.c.l.b16 %v1226
  %v1396 = vunpack.c.h.b16 %v1226
  %v1397 = vunpack.c.l.b16 %v1227
  %v1398 = vunpack.c.h.b16 %v1227
  %v1399 = vunpack.c.l.b16 %v1228
  %v1400 = vunpack.c.h.b16 %v1228
  %v1401 = vunpack.c.l.b16 %v1229
  %v1402 = vunpack.c.h.b16 %v1229
  %v1403 = vunpack.c.l.b16 %v1230
  %v1404 = vunpack.c.h.b16 %v1230
  %v1405 = vunpack.c.l.b16 %v1231
  %v1406 = vunpack.c.h.b16 %v1231
  %v1407 = vunpack.c.l.b16 %v1232
  %v1408 = vunpack.c.h.b16 %v1232
  %v1409 = vunpack.c.l.b16 %v1233
  %v1410 = vunpack.c.h.b16 %v1233
  %v1411 = vunpack.c.l.b16 %v1234
  %v1412 = vunpack.c.h.b16 %v1234
  %v1413 = vunpack.c.l.b16 %v1235
  %v1414 = vunpack.c.h.b16 %v1235
  %v1415 = vunpack.c.l.b16 %v1236
  %v1416 = vunpack.c.h.b16 %v1236
  %v1417 = vunpack.c.l.b16 %v1237
  %v1418 = vunpack.c.h.b16 %v1237
  %v1419 = vunpack.c.l.b16 %v1238
  %v1420 = vunpack.c.h.b16 %v1238
  %v1421 = vunpack.c.l.b16 %v1239
  %v1422 = vunpack.c.h.b16 %v1239
  %v1423 = vunpack.c.l.b16 %v1240
  %v1424 = vunpack.c.h.b16 %v1240
  %v1425 = vunpack.c.l.b16 %v1241
  %v1426 = vunpack.c.h.b16 %v1241
  %v1427 = vpack.c.b16 %v1397, %v1395
  %v1428 = vpack.c.b16 %v1398, %v1396
  %v1429 = vpack.c.b16 %v1401, %v1399
  %v1430 = vpack.c.b16 %v1402, %v1400
  %v1431 = vpack.c.b16 %v1405, %v1403
  %v1432 = vpack.c.b16 %v1406, %v1404
  %v1433 = vpack.c.b16 %v1409, %v1407
  %v1434 = vpack.c.b16 %v1410, %v1408
  %v1435 = vpack.c.b16 %v1413, %v1411
  %v1436 = vpack.c.b16 %v1414, %v1412
  %v1437 = vpack.c.b16 %v1417, %v1415
  %v1438 = vpack.c.b16 %v1418, %v1416
  %v1439 = vpack.c.b16 %v1421, %v1419
  %v1440 = vpack.c.b16 %v1422, %v1420
  %v1441 = vpack.c.b16 %v1425, %v1423
  %v1442 = vpack.c.b16 %v1426, %v1424
  %1459 = vmatprep.subr.bf16.mxu0 %v1428
  %1460 = vmatpush1.bf16.msra.mxu0 %v1427
  %1461 = vmatprep.subr.bf16.mxu0 %v1430
  %1462 = vmatpush1.bf16.msra.mxu0 %v1429
  %1463 = vmatprep.subr.bf16.mxu0 %v1432
  %1464 = vmatpush1.bf16.msra.mxu0 %v1431
  %1465 = vmatprep.subr.bf16.mxu0 %v1434
  %1466 = vmatpush1.bf16.msra.mxu0 %v1433
  %1467 = vmatprep.subr.bf16.mxu0 %v1436
  %1468 = vmatpush1.bf16.msra.mxu0 %v1435
  %1469 = vmatprep.subr.bf16.mxu0 %v1438
  %1470 = vmatpush1.bf16.msra.mxu0 %v1437
  %1471 = vmatprep.subr.bf16.mxu0 %v1440
  %1472 = vmatpush1.bf16.msra.mxu0 %v1439
  %1473 = vmatprep.subr.bf16.mxu0 %v1442
  %1474 = vmatpush1.bf16.msra.mxu0 %v1441
  %1475 = vmatprep.subr.bf16.mxu0 0
  %1476 = vmatpush1.bf16.msra.mxu0 0
  %1477 = vmatprep.subr.bf16.mxu0 0
  %1478 = vmatpush1.bf16.msra.mxu0 0
  %1479 = vmatprep.subr.bf16.mxu0 0
  %1480 = vmatpush1.bf16.msra.mxu0 0
  %1481 = vmatprep.subr.bf16.mxu0 0
  %1482 = vmatpush1.bf16.msra.mxu0 0
  %1483 = vmatprep.subr.bf16.mxu0 0
  %1484 = vmatpush1.bf16.msra.mxu0 0
  %1485 = vmatprep.subr.bf16.mxu0 0
  %1486 = vmatpush1.bf16.msra.mxu0 0
  %1487 = vmatprep.subr.bf16.mxu0 0
  %1488 = vmatpush1.bf16.msra.mxu0 0
  %1489 = vmatprep.subr.bf16.mxu0 0
  %1490 = vmatpush1.bf16.msra.mxu0 0
  %1491 = vmatprep.mubr.bf16.mxu0 0
  %1492 = vmatmul.mubr.bf16.gmra.mrb[0].mxu0 %v1225
  %v1493 = vpop.f32.mrb[0].mxu0
  %v1494 = vadd.f32 %v1373, %v1493
  %v1495 = vpop.f32.mrb[0].mxu0
  %v1496 = vadd.f32 %v1375, %v1495
  %v1497 = vpop.f32.mrb[0].mxu0
  %v1498 = vpop.f32.mrb[0].mxu0
  %1499 = vdwg.mxu0
  %v1500 = vld [vmem:[%s10] sm:$0x3]
  %v1502 = vlaneseq
  %v1503 = vshrl.u32 %v1502, 7
  %v1504 = vsub.s32 0, %v1503
  %v1505 = vrot.slane %v1500, %v1504
  %v1506 = vlaneseq
  %v1507 = vshrl.u32 %v1506, 7
  %v1508 = vsub.s32 1, %v1507
  %v1509 = vrot.slane %v1500, %v1508
  %v1512 = vadd.f32 %v1494, %v1505
  %v1513 = vadd.f32 %v1496, %v1509
  %v1514 = vmax.f32 %v1512, 0.0
  %v1515 = vmax.f32 %v1513, 0.0
  %v1516 = vpack.c.bf16 %v1514, %v1514
  %v1517 = vpack.c.bf16 %v1515, %v1515
  %v1518 = vld [vmem:[%s11] sm:$0xff]
  %v1519 = vld [vmem:[%s11 + $0x8] sm:$0xff]
  %v1520 = vld [vmem:[%s11 + $0x10] sm:$0xff]
  %v1521 = vld [vmem:[%s11 + $0x18] sm:$0xf]
  %v1522 = vld [vmem:[%s11 + $0x1c] sm:$0xff]
  %v1523 = vld [vmem:[%s11 + $0x24] sm:$0xff]
  %v1524 = vld [vmem:[%s11 + $0x2c] sm:$0xff]
  %v1525 = vld [vmem:[%s11 + $0x34] sm:$0xf]
  %v1526 = vld [vmem:[%s11 + $0x38] sm:$0xff]
  %v1527 = vld [vmem:[%s11 + $0x40] sm:$0xff]
  %v1528 = vld [vmem:[%s11 + $0x48] sm:$0xff]
  %v1529 = vld [vmem:[%s11 + $0x50] sm:$0xf]
  %v1530 = vld [vmem:[%s11 + $0x54] sm:$0xff]
  %v1531 = vld [vmem:[%s11 + $0x5c] sm:$0xff]
  %v1532 = vld [vmem:[%s11 + $0x64] sm:$0xff]
  %v1533 = vld [vmem:[%s11 + $0x6c] sm:$0xf]
  %v1534 = vld [vmem:[%s11 + $0x70] sm:$0xff]
  %v1535 = vld [vmem:[%s11 + $0x78] sm:$0xff]
  %v1536 = vld [vmem:[%s11 + $0x80] sm:$0xff]
  %v1537 = vld [vmem:[%s11 + $0x88] sm:$0xf]
  %v1538 = vld [vmem:[%s11 + $0x8c] sm:$0xff]
  %v1539 = vld [vmem:[%s11 + $0x94] sm:$0xff]
  %v1540 = vld [vmem:[%s11 + $0x9c] sm:$0xff]
  %v1541 = vld [vmem:[%s11 + $0xa4] sm:$0xf]
  %v1542 = vld [vmem:[%s11 + $0xa8] sm:$0xff]
  %v1543 = vld [vmem:[%s11 + $0xb0] sm:$0xff]
  %v1544 = vld [vmem:[%s11 + $0xb8] sm:$0xff]
  %v1545 = vld [vmem:[%s11 + $0xc0] sm:$0xf]
  %v1546 = vld [vmem:[%s11 + $0xc4] sm:$0xff]
  %v1547 = vld [vmem:[%s11 + $0xcc] sm:$0xff]
  %v1548 = vld [vmem:[%s11 + $0xd4] sm:$0xff]
  %v1549 = vld [vmem:[%s11 + $0xdc] sm:$0xf]
  %v1550 = vld [vmem:[%s11 + $0xe0] sm:$0xff]
  %v1551 = vld [vmem:[%s11 + $0xe8] sm:$0xff]
  %v1552 = vld [vmem:[%s11 + $0xf0] sm:$0xff]
  %v1553 = vld [vmem:[%s11 + $0xf8] sm:$0xf]
  %v1554 = vld [vmem:[%s11 + $0xfc] sm:$0xff]
  %v1555 = vld [vmem:[%s11 + $0x104] sm:$0xff]
  %v1556 = vld [vmem:[%s11 + $0x10c] sm:$0xff]
  %v1557 = vld [vmem:[%s11 + $0x114] sm:$0xf]
  %v1558 = vld [vmem:[%s11 + $0x118] sm:$0xff]
  %v1559 = vld [vmem:[%s11 + $0x120] sm:$0xff]
  %v1560 = vld [vmem:[%s11 + $0x128] sm:$0xff]
  %v1561 = vld [vmem:[%s11 + $0x130] sm:$0xf]
  %v1562 = vld [vmem:[%s11 + $0x134] sm:$0xff]
  %v1563 = vld [vmem:[%s11 + $0x13c] sm:$0xff]
  %v1564 = vld [vmem:[%s11 + $0x144] sm:$0xff]
  %v1565 = vld [vmem:[%s11 + $0x14c] sm:$0xf]
  %v1566 = vld [vmem:[%s11 + $0x150] sm:$0xff]
  %v1567 = vld [vmem:[%s11 + $0x158] sm:$0xff]
  %v1568 = vld [vmem:[%s11 + $0x160] sm:$0xff]
  %v1569 = vld [vmem:[%s11 + $0x168] sm:$0xf]
  %v1570 = vld [vmem:[%s11 + $0x16c] sm:$0xff]
  %v1571 = vld [vmem:[%s11 + $0x174] sm:$0xff]
  %v1572 = vld [vmem:[%s11 + $0x17c] sm:$0xff]
  %v1573 = vld [vmem:[%s11 + $0x184] sm:$0xf]
  %v1574 = vld [vmem:[%s11 + $0x188] sm:$0xff]
  %v1575 = vld [vmem:[%s11 + $0x190] sm:$0xff]
  %v1576 = vld [vmem:[%s11 + $0x198] sm:$0xff]
  %v1577 = vld [vmem:[%s11 + $0x1a0] sm:$0xf]
  %v1578 = vld [vmem:[%s11 + $0x1a4] sm:$0xff]
  %v1579 = vld [vmem:[%s11 + $0x1ac] sm:$0xff]
  %v1580 = vld [vmem:[%s11 + $0x1b4] sm:$0xff]
  %v1581 = vld [vmem:[%s11 + $0x1bc] sm:$0xf]
  %v1582 = vld [vmem:[%s11 + $0x1c0] sm:$0xff]
  %v1583 = vld [vmem:[%s11 + $0x1c8] sm:$0xff]
  %v1584 = vld [vmem:[%s11 + $0x1d0] sm:$0xff]
  %v1585 = vld [vmem:[%s11 + $0x1d8] sm:$0xf]
  %v1586 = vld [vmem:[%s11 + $0x1dc] sm:$0xff]
  %v1587 = vld [vmem:[%s11 + $0x1e4] sm:$0xff]
  %v1588 = vld [vmem:[%s11 + $0x1ec] sm:$0xff]
  %v1589 = vld [vmem:[%s11 + $0x1f4] sm:$0xf]
  %v1590 = vld [vmem:[%s11 + $0x1f8] sm:$0xff]
  %v1591 = vld [vmem:[%s11 + $0x200] sm:$0xff]
  %v1592 = vld [vmem:[%s11 + $0x208] sm:$0xff]
  %v1593 = vld [vmem:[%s11 + $0x210] sm:$0xf]
  %v1594 = vld [vmem:[%s11 + $0x214] sm:$0xff]
  %v1595 = vld [vmem:[%s11 + $0x21c] sm:$0xff]
  %v1596 = vld [vmem:[%s11 + $0x224] sm:$0xff]
  %v1597 = vld [vmem:[%s11 + $0x22c] sm:$0xf]
  %v1598 = vld [vmem:[%s11 + $0x230] sm:$0xff]
  %v1599 = vld [vmem:[%s11 + $0x238] sm:$0xff]
  %v1600 = vld [vmem:[%s11 + $0x240] sm:$0xff]
  %v1601 = vld [vmem:[%s11 + $0x248] sm:$0xf]
  %v1602 = vld [vmem:[%s11 + $0x24c] sm:$0xff]
  %v1603 = vld [vmem:[%s11 + $0x254] sm:$0xff]
  %v1604 = vld [vmem:[%s11 + $0x25c] sm:$0xff]
  %v1605 = vld [vmem:[%s11 + $0x264] sm:$0xf]
  %v1606 = vld [vmem:[%s11 + $0x268] sm:$0xff]
  %v1607 = vld [vmem:[%s11 + $0x270] sm:$0xff]
  %v1608 = vld [vmem:[%s11 + $0x278] sm:$0xff]
  %v1609 = vld [vmem:[%s11 + $0x280] sm:$0xf]
  %v1610 = vld [vmem:[%s11 + $0x284] sm:$0xff]
  %v1611 = vld [vmem:[%s11 + $0x28c] sm:$0xff]
  %v1612 = vld [vmem:[%s11 + $0x294] sm:$0xff]
  %v1613 = vld [vmem:[%s11 + $0x29c] sm:$0xf]
  %v1614 = vld [vmem:[%s11 + $0x2a0] sm:$0xff]
  %v1615 = vld [vmem:[%s11 + $0x2a8] sm:$0xff]
  %v1616 = vld [vmem:[%s11 + $0x2b0] sm:$0xff]
  %v1617 = vld [vmem:[%s11 + $0x2b8] sm:$0xf]
  %v1618 = vld [vmem:[%s11 + $0x2bc] sm:$0xff]
  %v1619 = vld [vmem:[%s11 + $0x2c4] sm:$0xff]
  %v1620 = vld [vmem:[%s11 + $0x2cc] sm:$0xff]
  %v1621 = vld [vmem:[%s11 + $0x2d4] sm:$0xf]
  %v1622 = vld [vmem:[%s11 + $0x2d8] sm:$0xff]
  %v1623 = vld [vmem:[%s11 + $0x2e0] sm:$0xff]
  %v1624 = vld [vmem:[%s11 + $0x2e8] sm:$0xff]
  %v1625 = vld [vmem:[%s11 + $0x2f0] sm:$0xf]
  %v1626 = vld [vmem:[%s11 + $0x2f4] sm:$0xff]
  %v1627 = vld [vmem:[%s11 + $0x2fc] sm:$0xff]
  %v1628 = vld [vmem:[%s11 + $0x304] sm:$0xff]
  %v1629 = vld [vmem:[%s11 + $0x30c] sm:$0xf]
  %v1630 = vld [vmem:[%s11 + $0x310] sm:$0xff]
  %v1631 = vld [vmem:[%s11 + $0x318] sm:$0xff]
  %v1632 = vld [vmem:[%s11 + $0x320] sm:$0xff]
  %v1633 = vld [vmem:[%s11 + $0x328] sm:$0xf]
  %v1634 = vld [vmem:[%s11 + $0x32c] sm:$0xff]
  %v1635 = vld [vmem:[%s11 + $0x334] sm:$0xff]
  %v1636 = vld [vmem:[%s11 + $0x33c] sm:$0xff]
  %v1637 = vld [vmem:[%s11 + $0x344] sm:$0xf]
  %v1638 = vld [vmem:[%s11 + $0x348] sm:$0xff]
  %v1639 = vld [vmem:[%s11 + $0x350] sm:$0xff]
  %v1640 = vld [vmem:[%s11 + $0x358] sm:$0xff]
  %v1641 = vld [vmem:[%s11 + $0x360] sm:$0xf]
  %v1642 = vld [vmem:[%s11 + $0x364] sm:$0xff]
  %v1643 = vld [vmem:[%s11 + $0x36c] sm:$0xff]
  %v1644 = vld [vmem:[%s11 + $0x374] sm:$0xff]
  %v1645 = vld [vmem:[%s11 + $0x37c] sm:$0xf]
  %v1646 = vld [vmem:[%s12] sm:$0x7f]
  %v1648 = vlaneseq
  %v1649 = vshrl.u32 %v1648, 7
  %v1650 = vsub.s32 0, %v1649
  %v1651 = vrot.slane %v1646, %v1650
  %v1652 = vlaneseq
  %v1653 = vshrl.u32 %v1652, 7
  %v1654 = vsub.s32 1, %v1653
  %v1655 = vrot.slane %v1646, %v1654
  %v1656 = vlaneseq
  %v1657 = vshrl.u32 %v1656, 7
  %v1658 = vsub.s32 2, %v1657
  %v1659 = vrot.slane %v1646, %v1658
  %v1660 = vlaneseq
  %v1661 = vshrl.u32 %v1660, 7
  %v1662 = vsub.s32 3, %v1661
  %v1663 = vrot.slane %v1646, %v1662
  %v1664 = vlaneseq
  %v1665 = vshrl.u32 %v1664, 7
  %v1666 = vsub.s32 4, %v1665
  %v1667 = vrot.slane %v1646, %v1666
  %v1668 = vlaneseq
  %v1669 = vshrl.u32 %v1668, 7
  %v1670 = vsub.s32 5, %v1669
  %v1671 = vrot.slane %v1646, %v1670
  %v1672 = vlaneseq
  %v1673 = vshrl.u32 %v1672, 7
  %v1674 = vsub.s32 6, %v1673
  %v1675 = vrot.slane %v1646, %v1674
  %v1811 = vunpack.c.l.b16 %v1518
  %v1812 = vunpack.c.h.b16 %v1518
  %v1813 = vunpack.c.l.b16 %v1519
  %v1814 = vunpack.c.h.b16 %v1519
  %v1815 = vunpack.c.l.b16 %v1520
  %v1816 = vunpack.c.h.b16 %v1520
  %v1817 = vunpack.c.l.b16 %v1521
  %v1818 = vunpack.c.l.b16 %v1522
  %v1819 = vunpack.c.h.b16 %v1522
  %v1820 = vunpack.c.l.b16 %v1523
  %v1821 = vunpack.c.h.b16 %v1523
  %v1822 = vunpack.c.l.b16 %v1524
  %v1823 = vunpack.c.h.b16 %v1524
  %v1824 = vunpack.c.l.b16 %v1525
  %v1825 = vunpack.c.l.b16 %v1526
  %v1826 = vunpack.c.h.b16 %v1526
  %v1827 = vunpack.c.l.b16 %v1527
  %v1828 = vunpack.c.h.b16 %v1527
  %v1829 = vunpack.c.l.b16 %v1528
  %v1830 = vunpack.c.h.b16 %v1528
  %v1831 = vunpack.c.l.b16 %v1529
  %v1832 = vunpack.c.l.b16 %v1530
  %v1833 = vunpack.c.h.b16 %v1530
  %v1834 = vunpack.c.l.b16 %v1531
  %v1835 = vunpack.c.h.b16 %v1531
  %v1836 = vunpack.c.l.b16 %v1532
  %v1837 = vunpack.c.h.b16 %v1532
  %v1838 = vunpack.c.l.b16 %v1533
  %v1839 = vunpack.c.l.b16 %v1534
  %v1840 = vunpack.c.h.b16 %v1534
  %v1841 = vunpack.c.l.b16 %v1535
  %v1842 = vunpack.c.h.b16 %v1535
  %v1843 = vunpack.c.l.b16 %v1536
  %v1844 = vunpack.c.h.b16 %v1536
  %v1845 = vunpack.c.l.b16 %v1537
  %v1846 = vunpack.c.l.b16 %v1538
  %v1847 = vunpack.c.h.b16 %v1538
  %v1848 = vunpack.c.l.b16 %v1539
  %v1849 = vunpack.c.h.b16 %v1539
  %v1850 = vunpack.c.l.b16 %v1540
  %v1851 = vunpack.c.h.b16 %v1540
  %v1852 = vunpack.c.l.b16 %v1541
  %v1853 = vunpack.c.l.b16 %v1542
  %v1854 = vunpack.c.h.b16 %v1542
  %v1855 = vunpack.c.l.b16 %v1543
  %v1856 = vunpack.c.h.b16 %v1543
  %v1857 = vunpack.c.l.b16 %v1544
  %v1858 = vunpack.c.h.b16 %v1544
  %v1859 = vunpack.c.l.b16 %v1545
  %v1860 = vunpack.c.l.b16 %v1546
  %v1861 = vunpack.c.h.b16 %v1546
  %v1862 = vunpack.c.l.b16 %v1547
  %v1863 = vunpack.c.h.b16 %v1547
  %v1864 = vunpack.c.l.b16 %v1548
  %v1865 = vunpack.c.h.b16 %v1548
  %v1866 = vunpack.c.l.b16 %v1549
  %v1867 = vunpack.c.l.b16 %v1550
  %v1868 = vunpack.c.h.b16 %v1550
  %v1869 = vunpack.c.l.b16 %v1551
  %v1870 = vunpack.c.h.b16 %v1551
  %v1871 = vunpack.c.l.b16 %v1552
  %v1872 = vunpack.c.h.b16 %v1552
  %v1873 = vunpack.c.l.b16 %v1553
  %v1874 = vunpack.c.l.b16 %v1554
  %v1875 = vunpack.c.h.b16 %v1554
  %v1876 = vunpack.c.l.b16 %v1555
  %v1877 = vunpack.c.h.b16 %v1555
  %v1878 = vunpack.c.l.b16 %v1556
  %v1879 = vunpack.c.h.b16 %v1556
  %v1880 = vunpack.c.l.b16 %v1557
  %v1881 = vunpack.c.l.b16 %v1558
  %v1882 = vunpack.c.h.b16 %v1558
  %v1883 = vunpack.c.l.b16 %v1559
  %v1884 = vunpack.c.h.b16 %v1559
  %v1885 = vunpack.c.l.b16 %v1560
  %v1886 = vunpack.c.h.b16 %v1560
  %v1887 = vunpack.c.l.b16 %v1561
  %v1888 = vunpack.c.l.b16 %v1562
  %v1889 = vunpack.c.h.b16 %v1562
  %v1890 = vunpack.c.l.b16 %v1563
  %v1891 = vunpack.c.h.b16 %v1563
  %v1892 = vunpack.c.l.b16 %v1564
  %v1893 = vunpack.c.h.b16 %v1564
  %v1894 = vunpack.c.l.b16 %v1565
  %v1895 = vunpack.c.l.b16 %v1566
  %v1896 = vunpack.c.h.b16 %v1566
  %v1897 = vunpack.c.l.b16 %v1567
  %v1898 = vunpack.c.h.b16 %v1567
  %v1899 = vunpack.c.l.b16 %v1568
  %v1900 = vunpack.c.h.b16 %v1568
  %v1901 = vunpack.c.l.b16 %v1569
  %v1902 = vunpack.c.l.b16 %v1570
  %v1903 = vunpack.c.h.b16 %v1570
  %v1904 = vunpack.c.l.b16 %v1571
  %v1905 = vunpack.c.h.b16 %v1571
  %v1906 = vunpack.c.l.b16 %v1572
  %v1907 = vunpack.c.h.b16 %v1572
  %v1908 = vunpack.c.l.b16 %v1573
  %v1909 = vunpack.c.l.b16 %v1574
  %v1910 = vunpack.c.h.b16 %v1574
  %v1911 = vunpack.c.l.b16 %v1575
  %v1912 = vunpack.c.h.b16 %v1575
  %v1913 = vunpack.c.l.b16 %v1576
  %v1914 = vunpack.c.h.b16 %v1576
  %v1915 = vunpack.c.l.b16 %v1577
  %v1916 = vunpack.c.l.b16 %v1578
  %v1917 = vunpack.c.h.b16 %v1578
  %v1918 = vunpack.c.l.b16 %v1579
  %v1919 = vunpack.c.h.b16 %v1579
  %v1920 = vunpack.c.l.b16 %v1580
  %v1921 = vunpack.c.h.b16 %v1580
  %v1922 = vunpack.c.l.b16 %v1581
  %v1923 = vunpack.c.l.b16 %v1582
  %v1924 = vunpack.c.h.b16 %v1582
  %v1925 = vunpack.c.l.b16 %v1583
  %v1926 = vunpack.c.h.b16 %v1583
  %v1927 = vunpack.c.l.b16 %v1584
  %v1928 = vunpack.c.h.b16 %v1584
  %v1929 = vunpack.c.l.b16 %v1585
  %v1930 = vunpack.c.l.b16 %v1586
  %v1931 = vunpack.c.h.b16 %v1586
  %v1932 = vunpack.c.l.b16 %v1587
  %v1933 = vunpack.c.h.b16 %v1587
  %v1934 = vunpack.c.l.b16 %v1588
  %v1935 = vunpack.c.h.b16 %v1588
  %v1936 = vunpack.c.l.b16 %v1589
  %v1937 = vunpack.c.l.b16 %v1590
  %v1938 = vunpack.c.h.b16 %v1590
  %v1939 = vunpack.c.l.b16 %v1591
  %v1940 = vunpack.c.h.b16 %v1591
  %v1941 = vunpack.c.l.b16 %v1592
  %v1942 = vunpack.c.h.b16 %v1592
  %v1943 = vunpack.c.l.b16 %v1593
  %v1944 = vunpack.c.l.b16 %v1594
  %v1945 = vunpack.c.h.b16 %v1594
  %v1946 = vunpack.c.l.b16 %v1595
  %v1947 = vunpack.c.h.b16 %v1595
  %v1948 = vunpack.c.l.b16 %v1596
  %v1949 = vunpack.c.h.b16 %v1596
  %v1950 = vunpack.c.l.b16 %v1597
  %v1951 = vunpack.c.l.b16 %v1598
  %v1952 = vunpack.c.h.b16 %v1598
  %v1953 = vunpack.c.l.b16 %v1599
  %v1954 = vunpack.c.h.b16 %v1599
  %v1955 = vunpack.c.l.b16 %v1600
  %v1956 = vunpack.c.h.b16 %v1600
  %v1957 = vunpack.c.l.b16 %v1601
  %v1958 = vunpack.c.l.b16 %v1602
  %v1959 = vunpack.c.h.b16 %v1602
  %v1960 = vunpack.c.l.b16 %v1603
  %v1961 = vunpack.c.h.b16 %v1603
  %v1962 = vunpack.c.l.b16 %v1604
  %v1963 = vunpack.c.h.b16 %v1604
  %v1964 = vunpack.c.l.b16 %v1605
  %v1965 = vunpack.c.l.b16 %v1606
  %v1966 = vunpack.c.h.b16 %v1606
  %v1967 = vunpack.c.l.b16 %v1607
  %v1968 = vunpack.c.h.b16 %v1607
  %v1969 = vunpack.c.l.b16 %v1608
  %v1970 = vunpack.c.h.b16 %v1608
  %v1971 = vunpack.c.l.b16 %v1609
  %v1972 = vunpack.c.l.b16 %v1610
  %v1973 = vunpack.c.h.b16 %v1610
  %v1974 = vunpack.c.l.b16 %v1611
  %v1975 = vunpack.c.h.b16 %v1611
  %v1976 = vunpack.c.l.b16 %v1612
  %v1977 = vunpack.c.h.b16 %v1612
  %v1978 = vunpack.c.l.b16 %v1613
  %v1979 = vunpack.c.l.b16 %v1614
  %v1980 = vunpack.c.h.b16 %v1614
  %v1981 = vunpack.c.l.b16 %v1615
  %v1982 = vunpack.c.h.b16 %v1615
  %v1983 = vunpack.c.l.b16 %v1616
  %v1984 = vunpack.c.h.b16 %v1616
  %v1985 = vunpack.c.l.b16 %v1617
  %v1986 = vunpack.c.l.b16 %v1618
  %v1987 = vunpack.c.h.b16 %v1618
  %v1988 = vunpack.c.l.b16 %v1619
  %v1989 = vunpack.c.h.b16 %v1619
  %v1990 = vunpack.c.l.b16 %v1620
  %v1991 = vunpack.c.h.b16 %v1620
  %v1992 = vunpack.c.l.b16 %v1621
  %v1993 = vunpack.c.l.b16 %v1622
  %v1994 = vunpack.c.h.b16 %v1622
  %v1995 = vunpack.c.l.b16 %v1623
  %v1996 = vunpack.c.h.b16 %v1623
  %v1997 = vunpack.c.l.b16 %v1624
  %v1998 = vunpack.c.h.b16 %v1624
  %v1999 = vunpack.c.l.b16 %v1625
  %v2000 = vunpack.c.l.b16 %v1626
  %v2001 = vunpack.c.h.b16 %v1626
  %v2002 = vunpack.c.l.b16 %v1627
  %v2003 = vunpack.c.h.b16 %v1627
  %v2004 = vunpack.c.l.b16 %v1628
  %v2005 = vunpack.c.h.b16 %v1628
  %v2006 = vunpack.c.l.b16 %v1629
  %v2007 = vunpack.c.l.b16 %v1630
  %v2008 = vunpack.c.h.b16 %v1630
  %v2009 = vunpack.c.l.b16 %v1631
  %v2010 = vunpack.c.h.b16 %v1631
  %v2011 = vunpack.c.l.b16 %v1632
  %v2012 = vunpack.c.h.b16 %v1632
  %v2013 = vunpack.c.l.b16 %v1633
  %v2014 = vunpack.c.l.b16 %v1634
  %v2015 = vunpack.c.h.b16 %v1634
  %v2016 = vunpack.c.l.b16 %v1635
  %v2017 = vunpack.c.h.b16 %v1635
  %v2018 = vunpack.c.l.b16 %v1636
  %v2019 = vunpack.c.h.b16 %v1636
  %v2020 = vunpack.c.l.b16 %v1637
  %v2021 = vunpack.c.l.b16 %v1638
  %v2022 = vunpack.c.h.b16 %v1638
  %v2023 = vunpack.c.l.b16 %v1639
  %v2024 = vunpack.c.h.b16 %v1639
  %v2025 = vunpack.c.l.b16 %v1640
  %v2026 = vunpack.c.h.b16 %v1640
  %v2027 = vunpack.c.l.b16 %v1641
  %v2028 = vunpack.c.l.b16 %v1642
  %v2029 = vunpack.c.h.b16 %v1642
  %v2030 = vunpack.c.l.b16 %v1643
  %v2031 = vunpack.c.h.b16 %v1643
  %v2032 = vunpack.c.l.b16 %v1644
  %v2033 = vunpack.c.h.b16 %v1644
  %v2034 = vunpack.c.l.b16 %v1645
  %v2035 = vpack.c.b16 %v1818, %v1811
  %v2036 = vpack.c.b16 %v1819, %v1812
  %v2037 = vpack.c.b16 %v1820, %v1813
  %v2038 = vpack.c.b16 %v1821, %v1814
  %v2039 = vpack.c.b16 %v1822, %v1815
  %v2040 = vpack.c.b16 %v1823, %v1816
  %v2041 = vpack.c.b16 %v1824, %v1817
  %v2042 = vpack.c.b16 %v1832, %v1825
  %v2043 = vpack.c.b16 %v1833, %v1826
  %v2044 = vpack.c.b16 %v1834, %v1827
  %v2045 = vpack.c.b16 %v1835, %v1828
  %v2046 = vpack.c.b16 %v1836, %v1829
  %v2047 = vpack.c.b16 %v1837, %v1830
  %v2048 = vpack.c.b16 %v1838, %v1831
  %v2049 = vpack.c.b16 %v1846, %v1839
  %v2050 = vpack.c.b16 %v1847, %v1840
  %v2051 = vpack.c.b16 %v1848, %v1841
  %v2052 = vpack.c.b16 %v1849, %v1842
  %v2053 = vpack.c.b16 %v1850, %v1843
  %v2054 = vpack.c.b16 %v1851, %v1844
  %v2055 = vpack.c.b16 %v1852, %v1845
  %v2056 = vpack.c.b16 %v1860, %v1853
  %v2057 = vpack.c.b16 %v1861, %v1854
  %v2058 = vpack.c.b16 %v1862, %v1855
  %v2059 = vpack.c.b16 %v1863, %v1856
  %v2060 = vpack.c.b16 %v1864, %v1857
  %v2061 = vpack.c.b16 %v1865, %v1858
  %v2062 = vpack.c.b16 %v1866, %v1859
  %v2063 = vpack.c.b16 %v1874, %v1867
  %v2064 = vpack.c.b16 %v1875, %v1868
  %v2065 = vpack.c.b16 %v1876, %v1869
  %v2066 = vpack.c.b16 %v1877, %v1870
  %v2067 = vpack.c.b16 %v1878, %v1871
  %v2068 = vpack.c.b16 %v1879, %v1872
  %v2069 = vpack.c.b16 %v1880, %v1873
  %v2070 = vpack.c.b16 %v1888, %v1881
  %v2071 = vpack.c.b16 %v1889, %v1882
  %v2072 = vpack.c.b16 %v1890, %v1883
  %v2073 = vpack.c.b16 %v1891, %v1884
  %v2074 = vpack.c.b16 %v1892, %v1885
  %v2075 = vpack.c.b16 %v1893, %v1886
  %v2076 = vpack.c.b16 %v1894, %v1887
  %v2077 = vpack.c.b16 %v1902, %v1895
  %v2078 = vpack.c.b16 %v1903, %v1896
  %v2079 = vpack.c.b16 %v1904, %v1897
  %v2080 = vpack.c.b16 %v1905, %v1898
  %v2081 = vpack.c.b16 %v1906, %v1899
  %v2082 = vpack.c.b16 %v1907, %v1900
  %v2083 = vpack.c.b16 %v1908, %v1901
  %v2084 = vpack.c.b16 %v1916, %v1909
  %v2085 = vpack.c.b16 %v1917, %v1910
  %v2086 = vpack.c.b16 %v1918, %v1911
  %v2087 = vpack.c.b16 %v1919, %v1912
  %v2088 = vpack.c.b16 %v1920, %v1913
  %v2089 = vpack.c.b16 %v1921, %v1914
  %v2090 = vpack.c.b16 %v1922, %v1915
  %v2091 = vpack.c.b16 %v1930, %v1923
  %v2092 = vpack.c.b16 %v1931, %v1924
  %v2093 = vpack.c.b16 %v1932, %v1925
  %v2094 = vpack.c.b16 %v1933, %v1926
  %v2095 = vpack.c.b16 %v1934, %v1927
  %v2096 = vpack.c.b16 %v1935, %v1928
  %v2097 = vpack.c.b16 %v1936, %v1929
  %v2098 = vpack.c.b16 %v1944, %v1937
  %v2099 = vpack.c.b16 %v1945, %v1938
  %v2100 = vpack.c.b16 %v1946, %v1939
  %v2101 = vpack.c.b16 %v1947, %v1940
  %v2102 = vpack.c.b16 %v1948, %v1941
  %v2103 = vpack.c.b16 %v1949, %v1942
  %v2104 = vpack.c.b16 %v1950, %v1943
  %v2105 = vpack.c.b16 %v1958, %v1951
  %v2106 = vpack.c.b16 %v1959, %v1952
  %v2107 = vpack.c.b16 %v1960, %v1953
  %v2108 = vpack.c.b16 %v1961, %v1954
  %v2109 = vpack.c.b16 %v1962, %v1955
  %v2110 = vpack.c.b16 %v1963, %v1956
  %v2111 = vpack.c.b16 %v1964, %v1957
  %v2112 = vpack.c.b16 %v1972, %v1965
  %v2113 = vpack.c.b16 %v1973, %v1966
  %v2114 = vpack.c.b16 %v1974, %v1967
  %v2115 = vpack.c.b16 %v1975, %v1968
  %v2116 = vpack.c.b16 %v1976, %v1969
  %v2117 = vpack.c.b16 %v1977, %v1970
  %v2118 = vpack.c.b16 %v1978, %v1971
  %v2119 = vpack.c.b16 %v1986, %v1979
  %v2120 = vpack.c.b16 %v1987, %v1980
  %v2121 = vpack.c.b16 %v1988, %v1981
  %v2122 = vpack.c.b16 %v1989, %v1982
  %v2123 = vpack.c.b16 %v1990, %v1983
  %v2124 = vpack.c.b16 %v1991, %v1984
  %v2125 = vpack.c.b16 %v1992, %v1985
  %v2126 = vpack.c.b16 %v2000, %v1993
  %v2127 = vpack.c.b16 %v2001, %v1994
  %v2128 = vpack.c.b16 %v2002, %v1995
  %v2129 = vpack.c.b16 %v2003, %v1996
  %v2130 = vpack.c.b16 %v2004, %v1997
  %v2131 = vpack.c.b16 %v2005, %v1998
  %v2132 = vpack.c.b16 %v2006, %v1999
  %v2133 = vpack.c.b16 %v2014, %v2007
  %v2134 = vpack.c.b16 %v2015, %v2008
  %v2135 = vpack.c.b16 %v2016, %v2009
  %v2136 = vpack.c.b16 %v2017, %v2010
  %v2137 = vpack.c.b16 %v2018, %v2011
  %v2138 = vpack.c.b16 %v2019, %v2012
  %v2139 = vpack.c.b16 %v2020, %v2013
  %v2140 = vpack.c.b16 %v2028, %v2021
  %v2141 = vpack.c.b16 %v2029, %v2022
  %v2142 = vpack.c.b16 %v2030, %v2023
  %v2143 = vpack.c.b16 %v2031, %v2024
  %v2144 = vpack.c.b16 %v2032, %v2025
  %v2145 = vpack.c.b16 %v2033, %v2026
  %v2146 = vpack.c.b16 %v2034, %v2027
  %2259 = vmatprep.subr.bf16.mxu0 %v2036
  %2260 = vmatpush1.bf16.msra.mxu0 %v2035
  %2261 = vmatprep.subr.bf16.mxu0 %v2043
  %2262 = vmatpush1.bf16.msra.mxu0 %v2042
  %2263 = vmatprep.subr.bf16.mxu0 %v2050
  %2264 = vmatpush1.bf16.msra.mxu0 %v2049
  %2265 = vmatprep.subr.bf16.mxu0 %v2057
  %2266 = vmatpush1.bf16.msra.mxu0 %v2056
  %2267 = vmatprep.subr.bf16.mxu0 %v2064
  %2268 = vmatpush1.bf16.msra.mxu0 %v2063
  %2269 = vmatprep.subr.bf16.mxu0 %v2071
  %2270 = vmatpush1.bf16.msra.mxu0 %v2070
  %2271 = vmatprep.subr.bf16.mxu0 %v2078
  %2272 = vmatpush1.bf16.msra.mxu0 %v2077
  %2273 = vmatprep.subr.bf16.mxu0 %v2085
  %2274 = vmatpush1.bf16.msra.mxu0 %v2084
  %2275 = vmatprep.subr.bf16.mxu0 %v2092
  %2276 = vmatpush1.bf16.msra.mxu0 %v2091
  %2277 = vmatprep.subr.bf16.mxu0 %v2099
  %2278 = vmatpush1.bf16.msra.mxu0 %v2098
  %2279 = vmatprep.subr.bf16.mxu0 %v2106
  %2280 = vmatpush1.bf16.msra.mxu0 %v2105
  %2281 = vmatprep.subr.bf16.mxu0 %v2113
  %2282 = vmatpush1.bf16.msra.mxu0 %v2112
  %2283 = vmatprep.subr.bf16.mxu0 %v2120
  %2284 = vmatpush1.bf16.msra.mxu0 %v2119
  %2285 = vmatprep.subr.bf16.mxu0 %v2127
  %2286 = vmatpush1.bf16.msra.mxu0 %v2126
  %2287 = vmatprep.subr.bf16.mxu0 %v2134
  %2288 = vmatpush1.bf16.msra.mxu0 %v2133
  %2289 = vmatprep.subr.bf16.mxu0 %v2141
  %2290 = vmatpush1.bf16.msra.mxu0 %v2140
  %2291 = vmatprep.mubr.bf16.mxu0 %v1517
  %2292 = vmatmul.mubr.bf16.gmra.mrb[0].mxu0 %v1516
  %v2293 = vpop.f32.mrb[0].mxu0
  %v2294 = vadd.f32 %v1651, %v2293
  %v2295 = vpop.f32.mrb[0].mxu0
  %v2296 = vadd.f32 %v1655, %v2295
  %v2297 = vpop.f32.mrb[0].mxu0
  %v2298 = vpop.f32.mrb[0].mxu0
  %2299 = vdwg.mxu0
  %2300 = vmatprep.subr.bf16.mxu0 %v2038
  %2301 = vmatpush1.bf16.msra.mxu0 %v2037
  %2302 = vmatprep.subr.bf16.mxu0 %v2045
  %2303 = vmatpush1.bf16.msra.mxu0 %v2044
  %2304 = vmatprep.subr.bf16.mxu0 %v2052
  %2305 = vmatpush1.bf16.msra.mxu0 %v2051
  %2306 = vmatprep.subr.bf16.mxu0 %v2059
  %2307 = vmatpush1.bf16.msra.mxu0 %v2058
  %2308 = vmatprep.subr.bf16.mxu0 %v2066
  %2309 = vmatpush1.bf16.msra.mxu0 %v2065
  %2310 = vmatprep.subr.bf16.mxu0 %v2073
  %2311 = vmatpush1.bf16.msra.mxu0 %v2072
  %2312 = vmatprep.subr.bf16.mxu0 %v2080
  %2313 = vmatpush1.bf16.msra.mxu0 %v2079
  %2314 = vmatprep.subr.bf16.mxu0 %v2087
  %2315 = vmatpush1.bf16.msra.mxu0 %v2086
  %2316 = vmatprep.subr.bf16.mxu0 %v2094
  %2317 = vmatpush1.bf16.msra.mxu0 %v2093
  %2318 = vmatprep.subr.bf16.mxu0 %v2101
  %2319 = vmatpush1.bf16.msra.mxu0 %v2100
  %2320 = vmatprep.subr.bf16.mxu0 %v2108
  %2321 = vmatpush1.bf16.msra.mxu0 %v2107
  %2322 = vmatprep.subr.bf16.mxu0 %v2115
  %2323 = vmatpush1.bf16.msra.mxu0 %v2114
  %2324 = vmatprep.subr.bf16.mxu0 %v2122
  %2325 = vmatpush1.bf16.msra.mxu0 %v2121
  %2326 = vmatprep.subr.bf16.mxu0 %v2129
  %2327 = vmatpush1.bf16.msra.mxu0 %v2128
  %2328 = vmatprep.subr.bf16.mxu0 %v2136
  %2329 = vmatpush1.bf16.msra.mxu0 %v2135
  %2330 = vmatprep.subr.bf16.mxu0 %v2143
  %2331 = vmatpush1.bf16.msra.mxu0 %v2142
  %2332 = vmatprep.mubr.bf16.mxu0 %v1517
  %2333 = vmatmul.mubr.bf16.gmra.mrb[0].mxu0 %v1516
  %v2334 = vpop.f32.mrb[0].mxu0
  %v2335 = vadd.f32 %v1659, %v2334
  %v2336 = vpop.f32.mrb[0].mxu0
  %v2337 = vadd.f32 %v1663, %v2336
  %v2338 = vpop.f32.mrb[0].mxu0
  %v2339 = vpop.f32.mrb[0].mxu0
  %2340 = vdwg.mxu0
  %2341 = vmatprep.subr.bf16.mxu0 %v2040
  %2342 = vmatpush1.bf16.msra.mxu0 %v2039
  %2343 = vmatprep.subr.bf16.mxu0 %v2047
  %2344 = vmatpush1.bf16.msra.mxu0 %v2046
  %2345 = vmatprep.subr.bf16.mxu0 %v2054
  %2346 = vmatpush1.bf16.msra.mxu0 %v2053
  %2347 = vmatprep.subr.bf16.mxu0 %v2061
  %2348 = vmatpush1.bf16.msra.mxu0 %v2060
  %2349 = vmatprep.subr.bf16.mxu0 %v2068
  %2350 = vmatpush1.bf16.msra.mxu0 %v2067
  %2351 = vmatprep.subr.bf16.mxu0 %v2075
  %2352 = vmatpush1.bf16.msra.mxu0 %v2074
  %2353 = vmatprep.subr.bf16.mxu0 %v2082
  %2354 = vmatpush1.bf16.msra.mxu0 %v2081
  %2355 = vmatprep.subr.bf16.mxu0 %v2089
  %2356 = vmatpush1.bf16.msra.mxu0 %v2088
  %2357 = vmatprep.subr.bf16.mxu0 %v2096
  %2358 = vmatpush1.bf16.msra.mxu0 %v2095
  %2359 = vmatprep.subr.bf16.mxu0 %v2103
  %2360 = vmatpush1.bf16.msra.mxu0 %v2102
  %2361 = vmatprep.subr.bf16.mxu0 %v2110
  %2362 = vmatpush1.bf16.msra.mxu0 %v2109
  %2363 = vmatprep.subr.bf16.mxu0 %v2117
  %2364 = vmatpush1.bf16.msra.mxu0 %v2116
  %2365 = vmatprep.subr.bf16.mxu0 %v2124
  %2366 = vmatpush1.bf16.msra.mxu0 %v2123
  %2367 = vmatprep.subr.bf16.mxu0 %v2131
  %2368 = vmatpush1.bf16.msra.mxu0 %v2130
  %2369 = vmatprep.subr.bf16.mxu0 %v2138
  %2370 = vmatpush1.bf16.msra.mxu0 %v2137
  %2371 = vmatprep.subr.bf16.mxu0 %v2145
  %2372 = vmatpush1.bf16.msra.mxu0 %v2144
  %2373 = vmatprep.mubr.bf16.mxu0 %v1517
  %2374 = vmatmul.mubr.bf16.gmra.mrb[0].mxu0 %v1516
  %v2375 = vpop.f32.mrb[0].mxu0
  %v2376 = vadd.f32 %v1667, %v2375
  %v2377 = vpop.f32.mrb[0].mxu0
  %v2378 = vadd.f32 %v1671, %v2377
  %v2379 = vpop.f32.mrb[0].mxu0
  %v2380 = vpop.f32.mrb[0].mxu0
  %2381 = vdwg.mxu0
  %2382 = vmatprep.subr.bf16.mxu0 0
  %2383 = vmatpush1.bf16.msra.mxu0 %v2041
  %2384 = vmatprep.subr.bf16.mxu0 0
  %2385 = vmatpush1.bf16.msra.mxu0 %v2048
  %2386 = vmatprep.subr.bf16.mxu0 0
  %2387 = vmatpush1.bf16.msra.mxu0 %v2055
  %2388 = vmatprep.subr.bf16.mxu0 0
  %2389 = vmatpush1.bf16.msra.mxu0 %v2062
  %2390 = vmatprep.subr.bf16.mxu0 0
  %2391 = vmatpush1.bf16.msra.mxu0 %v2069
  %2392 = vmatprep.subr.bf16.mxu0 0
  %2393 = vmatpush1.bf16.msra.mxu0 %v2076
  %2394 = vmatprep.subr.bf16.mxu0 0
  %2395 = vmatpush1.bf16.msra.mxu0 %v2083
  %2396 = vmatprep.subr.bf16.mxu0 0
  %2397 = vmatpush1.bf16.msra.mxu0 %v2090
  %2398 = vmatprep.subr.bf16.mxu0 0
  %2399 = vmatpush1.bf16.msra.mxu0 %v2097
  %2400 = vmatprep.subr.bf16.mxu0 0
  %2401 = vmatpush1.bf16.msra.mxu0 %v2104
  %2402 = vmatprep.subr.bf16.mxu0 0
  %2403 = vmatpush1.bf16.msra.mxu0 %v2111
  %2404 = vmatprep.subr.bf16.mxu0 0
  %2405 = vmatpush1.bf16.msra.mxu0 %v2118
  %2406 = vmatprep.subr.bf16.mxu0 0
  %2407 = vmatpush1.bf16.msra.mxu0 %v2125
  %2408 = vmatprep.subr.bf16.mxu0 0
  %2409 = vmatpush1.bf16.msra.mxu0 %v2132
  %2410 = vmatprep.subr.bf16.mxu0 0
  %2411 = vmatpush1.bf16.msra.mxu0 %v2139
  %2412 = vmatprep.subr.bf16.mxu0 0
  %2413 = vmatpush1.bf16.msra.mxu0 %v2146
  %2414 = vmatprep.mubr.bf16.mxu0 %v1517
  %2415 = vmatmul.mubr.bf16.gmra.mrb[0].mxu0 %v1516
  %v2416 = vpop.f32.mrb[0].mxu0
  %v2417 = vadd.f32 %v1675, %v2416
  %v2418 = vpop.f32.mrb[0].mxu0
  %v2419 = vpop.f32.mrb[0].mxu0
  %v2420 = vpop.f32.mrb[0].mxu0
  %2421 = vdwg.mxu0
  %v2422 = vxor.u32 %v2294, 2147483648
  %v2423 = vxor.u32 %v2296, 2147483648
  %v2424 = vxor.u32 %v2335, 2147483648
  %v2425 = vxor.u32 %v2337, 2147483648
  %v2426 = vxor.u32 %v2376, 2147483648
  %v2427 = vxor.u32 %v2378, 2147483648
  %v2428 = vxor.u32 %v2417, 2147483648
  %v2429 = vmul.f32 %v2422, 1.442695
  %v2430 = vpow.pop %v2429
  %v2431 = vmul.f32 %v2423, 1.442695
  %v2432 = vpow.pop %v2431
  %v2433 = vmul.f32 %v2424, 1.442695
  %v2434 = vpow.pop %v2433
  %v2435 = vmul.f32 %v2425, 1.442695
  %v2436 = vpow.pop %v2435
  %v2437 = vmul.f32 %v2426, 1.442695
  %v2438 = vpow.pop %v2437
  %v2439 = vmul.f32 %v2427, 1.442695
  %v2440 = vpow.pop %v2439
  %v2441 = vmul.f32 %v2428, 1.442695
  %v2442 = vpow.pop %v2441
  %v2443 = vadd.f32 %v2430, 1.0
  %v2444 = vadd.f32 %v2432, 1.0
  %v2445 = vadd.f32 %v2434, 1.0
  %v2446 = vadd.f32 %v2436, 1.0
  %v2447 = vadd.f32 %v2438, 1.0
  %v2448 = vadd.f32 %v2440, 1.0
  %v2449 = vadd.f32 %v2442, 1.0
  %v2450 = vrcp.pop %v2443
  %v2451 = vmul.f32 1.0, %v2450
  %v2452 = vrcp.pop %v2444
  %v2453 = vmul.f32 1.0, %v2452
  %v2454 = vrcp.pop %v2445
  %v2455 = vmul.f32 1.0, %v2454
  %v2456 = vrcp.pop %v2446
  %v2457 = vmul.f32 1.0, %v2456
  %v2458 = vrcp.pop %v2447
  %v2459 = vmul.f32 1.0, %v2458
  %v2460 = vrcp.pop %v2448
  %v2461 = vmul.f32 1.0, %v2460
  %v2462 = vrcp.pop %v2449
  %v2463 = vmul.f32 1.0, %v2462
  %v2464 = vpack.c.bf16 %v2451, %v2451
  %v2465 = vpack.c.bf16 %v2453, %v2453
  %v2466 = vpack.c.bf16 %v2455, %v2455
  %v2467 = vpack.c.bf16 %v2457, %v2457
  %v2468 = vpack.c.bf16 %v2459, %v2459
  %v2469 = vpack.c.bf16 %v2461, %v2461
  %v2470 = vpack.c.bf16 %v2463, %v2463
  %v2478 = vunpack.c.l.b16 %v2464
  %v2479 = vunpack.c.l.b16 %v2465
  %v2480 = vunpack.c.l.b16 %v2466
  %v2481 = vunpack.c.l.b16 %v2467
  %v2482 = vunpack.c.l.b16 %v2468
  %v2483 = vunpack.c.l.b16 %v2469
  %v2484 = vunpack.c.l.b16 %v2470
  %v2485 = vpack.c.b16 %v2479, %v2478
  %v2486 = vpack.c.b16 %v2481, %v2480
  %v2487 = vpack.c.b16 %v2483, %v2482
  %v2488 = vpack.c.b16 %v2484, %v2484
  %2493 = vst [vmem:[%s13] sm:$0xff] %v2485
  %2494 = vst [vmem:[%s13 + $0x8] sm:$0xff] %v2486
  %2495 = vst [vmem:[%s13 + $0x10] sm:$0xff] %v2487
  %vm2496 = vcmask 125952
  %2497 = vst.msk [vmem:[%s13 + $0x18] sm:$0xf] %vm2496, %v2488
  %2498 = vst [vmem:[%s14] sm:$0xff] %v1212
  %2499 = vst [vmem:[%s14 + $0x8] sm:$0xff] %v1214
  // Predicated region
  $region54: #{cvae_forward.1} parent=0 // pred_check
    _
  $region55: #{cvae_forward.1} parent=0 // pred_check_branch
    %2501 = sbr.rel (0) target = $region57
  $region56: #{cvae_forward.1} parent=0 // pred_region
    _
  $region57: #{cvae_forward.1} parent=0 // pred_fallthru
    _
  // Predicated region
  $region58: #{cvae_forward.1} parent=0 // pred_check
    _
  $region59: #{cvae_forward.1} parent=0 // pred_check_branch
    %2503 = sbr.rel (0) target = $region61
  $region60: #{cvae_forward.1} parent=0 // pred_region
    _
  $region61: #{cvae_forward.1} parent=0 // pred_fallthru
    _
  // Predicated region
  $region62: #{cvae_forward.1} parent=0 // pred_check
    _
  $region63: #{cvae_forward.1} parent=0 // pred_check_branch
    %2505 = sbr.rel (0) target = $region65
  $region64: #{cvae_forward.1} parent=0 // pred_region
    _
  $region65: #{cvae_forward.1} parent=0 // pred_fallthru
    _
  // Predicated region
  $region66: #{cvae_forward.1} parent=0 // pred_check
    _
  $region67: #{cvae_forward.1} parent=0 // pred_check_branch
    %2507 = sbr.rel (0) target = $region69
  $region68: #{cvae_forward.1} parent=0 // pred_region
    _
  $region69: #{cvae_forward.1} parent=0 // pred_fallthru
    _

</llo_original>
